<compile_context>
chip_gen: v7x
topology: tpu7x:2x2x1
jax: 0.10.0
libtpu: 0.0.40
codegen_flags: <defaults>
</compile_context>

<pallas_src>
import functools
import math

import jax
import jax.numpy as jnp
from jax.experimental import pallas as pl
from jax.experimental.pallas import tpu as pltpu


# ----------------------------------------------------------------------------
# Static slab layouts (plain Python ints; computed from the model dims).
# ----------------------------------------------------------------------------
def _round8(n):
    return -(-n // 8) * 8


def _pack_layout(entries):
    """entries: list of (name, rows, cols) -> (dict name->(off, rows, cols),
    total padded rows, slab width)."""
    layout = {}
    off = 0
    width = 1
    for name, rows, cols in entries:
        layout[name] = (off, rows, cols)
        off += _round8(rows)
        width = max(width, cols)
    return layout, off, width


def _weight_layout(dims):
    r_dim, z_dim, h_dim, x_dim, y_dim = dims
    entries = [
        ("enc_w1", x_dim + y_dim, h_dim),
        ("enc_b1", 1, h_dim),
        ("enc_w2", h_dim, h_dim),
        ("enc_b2", 1, h_dim),
        ("enc_w3", h_dim, r_dim),
        ("enc_b3", 1, r_dim),
        ("rz_wr", r_dim, r_dim),
        ("rz_br", 1, r_dim),
        ("rz_wms", r_dim, 2 * z_dim),
        ("rz_bms", 1, 2 * z_dim),
        ("dec_w1x", x_dim, h_dim),
        ("dec_w1z", z_dim, h_dim),
        ("dec_b1", 1, h_dim),
        ("dec_w2", h_dim, h_dim),
        ("dec_b2", 1, h_dim),
        ("dec_w3", h_dim, h_dim),
        ("dec_b3", 1, h_dim),
        ("dec_wms", h_dim, 2 * y_dim),
        ("dec_bms", 1, 2 * y_dim),
    ]
    return _pack_layout(entries)


def _data_layout(B, Nc, Nt, dims):
    r_dim, z_dim, h_dim, x_dim, y_dim = dims
    entries = [
        ("ctx", B * Nc, x_dim + y_dim),   # x_context || y_context, flattened
        ("xt", B * Nt, x_dim),            # x_target, flattened
        ("eps", B, z_dim),                # standard-normal sample for rsample
    ]
    return _pack_layout(entries)


# ----------------------------------------------------------------------------
# Fused kernel: Encoder -> aggregate -> MuSigmaEncoder -> rsample -> Decoder
# ----------------------------------------------------------------------------
def _np_forward_kernel(data_ref, w_ref, ctx_ms_ref, y_ms_ref,
                       *, B, Nc, Nt, dims, wlayout, dlayout):
    r_dim, z_dim, h_dim, x_dim, y_dim = dims
    f32 = jnp.float32

    def W(name):                                   # static (zero-cost) slices
        off, rows, cols = wlayout[name]
        return w_ref[off:off + rows, :cols]

    def D(name):
        off, rows, cols = dlayout[name]
        return data_ref[off:off + rows, :cols]

    xy = D("ctx")                                  # (B*Nc, x_dim+y_dim)
    xt = D("xt")                                   # (B*Nt, x_dim)
    eps = D("eps")                                 # (B, z_dim)

    # ---- Encoder MLP: Linear+Sigmoid, Linear+Sigmoid, Linear ----------------
    h = jax.nn.sigmoid(
        jnp.dot(xy, W("enc_w1"), preferred_element_type=f32) + W("enc_b1"))
    h = jax.nn.sigmoid(
        jnp.dot(h, W("enc_w2"), preferred_element_type=f32) + W("enc_b2"))
    r_i = jnp.dot(h, W("enc_w3"), preferred_element_type=f32) + W("enc_b3")

    # ---- Mean over the num_points axis --------------------------------------
    # Block-diagonal 1/Nc averaging weights built in-kernel (no HBM matrix):
    # agg[b, j] = 1/Nc  iff  b*Nc <= j < (b+1)*Nc.
    bidx = jax.lax.broadcasted_iota(jnp.int32, (B, B * Nc), 0)
    jidx = jax.lax.broadcasted_iota(jnp.int32, (B, B * Nc), 1)
    in_blk = (jidx >= bidx * Nc) & (jidx < (bidx + 1) * Nc)
    agg = jnp.where(in_blk, f32(1.0 / Nc), f32(0.0))
    r = jnp.dot(agg, r_i, preferred_element_type=f32)              # (B, r_dim)

    # ---- MuSigmaEncoder (spec module): relu hidden, fused mu||sigma head ----
    hid = jnp.maximum(
        jnp.dot(r, W("rz_wr"), preferred_element_type=f32) + W("rz_br"), 0.0)
    ms = jnp.dot(hid, W("rz_wms"), preferred_element_type=f32) + W("rz_bms")
    mu_c = ms[:, :z_dim]
    sigma_c = 0.1 + 0.9 * jax.nn.sigmoid(ms[:, z_dim:])
    ctx_ms_ref[...] = jnp.concatenate([mu_c, sigma_c], axis=1)      # (B, 2z)

    # ---- Reparameterized sample: z ~ Normal(mu, sigma).rsample() ------------
    z = mu_c + sigma_c * eps                                        # (B, z)

    # ---- Decoder MLP ---------------------------------------------------------
    # First layer: x-part per target row + z-part computed once per batch row
    # and replicated to its Nt target rows via a tiny one-hot matmul.
    zproj = jnp.dot(z, W("dec_w1z"), preferred_element_type=f32)    # (B, h)
    ridx = jax.lax.broadcasted_iota(jnp.int32, (B * Nt, B), 0)
    cidx = jax.lax.broadcasted_iota(jnp.int32, (B * Nt, B), 1)
    sel = ((ridx >= cidx * Nt) & (ridx < (cidx + 1) * Nt)).astype(f32)
    hd = jax.nn.sigmoid(
        jnp.dot(xt, W("dec_w1x"), preferred_element_type=f32)
        + jnp.dot(sel, zproj, preferred_element_type=f32)
        + W("dec_b1"))
    hd = jax.nn.sigmoid(
        jnp.dot(hd, W("dec_w2"), preferred_element_type=f32) + W("dec_b2"))
    hd = jax.nn.sigmoid(
        jnp.dot(hd, W("dec_w3"), preferred_element_type=f32) + W("dec_b3"))
    msd = jnp.dot(hd, W("dec_wms"), preferred_element_type=f32) + W("dec_bms")
    y_mu = msd[:, :y_dim]
    y_sigma = 0.1 + 0.9 * jax.nn.softplus(msd[:, y_dim:])
    y_ms_ref[...] = jnp.concatenate([y_mu, y_sigma], axis=1)        # (B*Nt, 2y)


# ----------------------------------------------------------------------------
# Jitted wrappers
# ----------------------------------------------------------------------------
@functools.partial(jax.jit, static_argnames=("dims",))
def neural_process_apply(w_slab, x_context, y_context, x_target, eps, *, dims):
    """Eval-mode forward with an explicit standard-normal sample eps (B, z_dim)."""
    r_dim, z_dim, h_dim, x_dim, y_dim = dims
    B, Nc, _ = x_context.shape
    _, Nt, _ = x_target.shape

    dlayout, drows, dcols = _data_layout(B, Nc, Nt, dims)
    wlayout, _, _ = _weight_layout(dims)

    # Single padded data slab (fuses into one input DMA).
    def place(slab, name, a):
        off, rows, cols = dlayout[name]
        return slab.at[off:off + rows, :cols].set(a.astype(jnp.float32))

    data = jnp.zeros((drows, dcols), jnp.float32)
    ctx = jnp.concatenate([x_context, y_context], axis=-1).reshape(
        B * Nc, x_dim + y_dim)
    data = place(data, "ctx", ctx)
    data = place(data, "xt", x_target.reshape(B * Nt, x_dim))
    data = place(data, "eps", eps)

    kernel = functools.partial(_np_forward_kernel, B=B, Nc=Nc, Nt=Nt, dims=dims,
                               wlayout=wlayout, dlayout=dlayout)

    ctx_ms, y_ms = pl.pallas_call(
        kernel,
        out_shape=(jax.ShapeDtypeStruct((B, 2 * z_dim), jnp.float32),
                   jax.ShapeDtypeStruct((B * Nt, 2 * y_dim), jnp.float32)),
        in_specs=[pl.BlockSpec(memory_space=pltpu.MemorySpace.VMEM),
                  pl.BlockSpec(memory_space=pltpu.MemorySpace.VMEM)],
        out_specs=(pl.BlockSpec(memory_space=pltpu.MemorySpace.VMEM),
                   pl.BlockSpec(memory_space=pltpu.MemorySpace.VMEM)),
    )(data, w_slab)

    mu_c = ctx_ms[:, :z_dim]
    sigma_c = ctx_ms[:, z_dim:]
    y_mu = y_ms[:, :y_dim].reshape(B, Nt, y_dim)
    y_sigma = y_ms[:, y_dim:].reshape(B, Nt, y_dim)
    return y_mu, y_sigma, mu_c, sigma_c


@functools.partial(jax.jit, static_argnames=("dims",))
def neural_process_forward(w_slab, x_context, y_context, x_target, rng, *, dims):
    """Eval-mode NeuralProcess.forward (self.training == False)."""
    z_dim = dims[1]
    B = x_context.shape[0]
    eps = jax.random.normal(rng, (B, z_dim), jnp.float32)
    return neural_process_apply(w_slab, x_context, y_context, x_target, eps,
                                dims=dims)


# ----------------------------------------------------------------------------
# Parameter init (PyTorch nn.Linear-style uniform(+-1/sqrt(fan_in))) + packing.
# ----------------------------------------------------------------------------
def init_params(key, r_dim, z_dim, h_dim, x_dim=1, y_dim=1):
    def linear(k, fan_in, fan_out):
        kw, kb = jax.random.split(k)
        bound = 1.0 / math.sqrt(fan_in)
        w = jax.random.uniform(kw, (fan_in, fan_out), jnp.float32, -bound, bound)
        b = jax.random.uniform(kb, (1, fan_out), jnp.float32, -bound, bound)
        return w, b

    keys = jax.random.split(key, 11)
    p = {}
    # Encoder (x_dim + y_dim -> h -> h -> r); first layer kept fused.
    p["enc_w1"], p["enc_b1"] = linear(keys[0], x_dim + y_dim, h_dim)
    p["enc_w2"], p["enc_b2"] = linear(keys[1], h_dim, h_dim)
    p["enc_w3"], p["enc_b3"] = linear(keys[2], h_dim, r_dim)
    # MuSigmaEncoder (r -> r -> z, z); mu/sigma heads fused along output axis.
    p["rz_wr"], p["rz_br"] = linear(keys[3], r_dim, r_dim)
    wmu, bmu = linear(keys[4], r_dim, z_dim)
    wsg, bsg = linear(keys[5], r_dim, z_dim)
    p["rz_wms"] = jnp.concatenate([wmu, wsg], axis=1)
    p["rz_bms"] = jnp.concatenate([bmu, bsg], axis=1)
    # Decoder (x_dim + z_dim -> h -> h -> h -> y, y); first layer split x/z,
    # heads fused.
    w1, b1 = linear(keys[6], x_dim + z_dim, h_dim)
    p["dec_w1x"], p["dec_w1z"], p["dec_b1"] = w1[:x_dim], w1[x_dim:], b1
    p["dec_w2"], p["dec_b2"] = linear(keys[7], h_dim, h_dim)
    p["dec_w3"], p["dec_b3"] = linear(keys[8], h_dim, h_dim)
    wmu, bmu = linear(keys[9], h_dim, y_dim)
    wsg, bsg = linear(keys[10], h_dim, y_dim)
    p["dec_wms"] = jnp.concatenate([wmu, wsg], axis=1)
    p["dec_bms"] = jnp.concatenate([bmu, bsg], axis=1)
    return p


def pack_params(raw, dims):
    """Pack all weights into one pre-padded (rows8-aligned) f32 slab, ONCE."""
    layout, nrows, ncols = _weight_layout(dims)
    slab = jnp.zeros((nrows, ncols), jnp.float32)
    for name, (off, rows, cols) in layout.items():
        slab = slab.at[off:off + rows, :cols].set(raw[name])
    return slab


# ----------------------------------------------------------------------------
# Pure-JAX reference (mirrors the PyTorch modules) for correctness checking.
# ----------------------------------------------------------------------------
def _reference_forward(raw, x_context, y_context, x_target, eps):
    p = raw
    B, Nc, _ = x_context.shape
    _, Nt, _ = x_target.shape
    xy = jnp.concatenate([x_context, y_context], axis=-1)
    h = jax.nn.sigmoid(xy @ p["enc_w1"] + p["enc_b1"])
    h = jax.nn.sigmoid(h @ p["enc_w2"] + p["enc_b2"])
    r_i = h @ p["enc_w3"] + p["enc_b3"]
    r = jnp.mean(r_i, axis=1)                                   # aggregate
    hid = jax.nn.relu(r @ p["rz_wr"] + p["rz_br"])              # MuSigmaEncoder
    ms = hid @ p["rz_wms"] + p["rz_bms"]
    z_dim = ms.shape[1] // 2
    mu_c = ms[:, :z_dim]
    sigma_c = 0.1 + 0.9 * jax.nn.sigmoid(ms[:, z_dim:])
    z = mu_c + sigma_c * eps                                    # rsample
    z_rep = jnp.broadcast_to(z[:, None, :], (B, Nt, z_dim))
    xz = jnp.concatenate([x_target, z_rep], axis=-1)
    dw1 = jnp.concatenate([p["dec_w1x"], p["dec_w1z"]], axis=0)
    hd = jax.nn.sigmoid(xz @ dw1 + p["dec_b1"])
    hd = jax.nn.sigmoid(hd @ p["dec_w2"] + p["dec_b2"])
    hd = jax.nn.sigmoid(hd @ p["dec_w3"] + p["dec_b3"])
    msd = hd @ p["dec_wms"] + p["dec_bms"]
    y_dim = msd.shape[-1] // 2
    y_mu = msd[..., :y_dim]
    y_sigma = 0.1 + 0.9 * jax.nn.softplus(msd[..., y_dim:])
    return y_mu, y_sigma, mu_c, sigma_c


if __name__ == "__main__":
    key = jax.random.PRNGKey(0)
    k_param, k_xc, k_yc, k_xt, k_z = jax.random.split(key, 5)

    r_dim, z_dim, h_dim = 32, 16, 32        # NeuralProcess(r_dim, z_dim, h_dim)
    B, Nc, Nt = 2, 8, 16                    # batch, num_context, num_target
    x_dim = y_dim = 1
    dims = (r_dim, z_dim, h_dim, x_dim, y_dim)

    raw = init_params(k_param, r_dim, z_dim, h_dim, x_dim, y_dim)
    w_slab = pack_params(raw, dims)

    x_context = jax.random.uniform(k_xc, (B, Nc, x_dim), jnp.float32)
    y_context = jax.random.uniform(k_yc, (B, Nc, y_dim), jnp.float32)
    x_target = jax.random.uniform(k_xt, (B, Nt, x_dim), jnp.float32)

    y_mu, y_sigma, mu_c, sigma_c = neural_process_forward(
        w_slab, x_context, y_context, x_target, k_z, dims=dims)
    jax.block_until_ready((y_mu, y_sigma, mu_c, sigma_c))

    # Shape / range checks.
    assert y_mu.shape == (B, Nt, y_dim) and y_sigma.shape == (B, Nt, y_dim)
    assert mu_c.shape == (B, z_dim) and sigma_c.shape == (B, z_dim)
    assert bool(jnp.all(y_sigma > 0.1)) and bool(jnp.all(sigma_c > 0.1))

    # Numerical check against the pure-JAX reference (same eps as the wrapper).
    eps = jax.random.normal(k_z, (B, z_dim), jnp.float32)
    ry_mu, ry_sigma, rmu_c, rsigma_c = _reference_forward(
        raw, x_context, y_context, x_target, eps)
    assert bool(jnp.allclose(y_mu, ry_mu, atol=1e-3, rtol=1e-3))
    assert bool(jnp.allclose(y_sigma, ry_sigma, atol=1e-3, rtol=1e-3))
    assert bool(jnp.allclose(mu_c, rmu_c, atol=1e-3, rtol=1e-3))
    assert bool(jnp.allclose(sigma_c, rsigma_c, atol=1e-3, rtol=1e-3))

    print("KERNEL_OK")
</pallas_src>

<mosaic_0001>
module attributes {stable_mosaic.version = 11 : i64} {
  func.func @_np_forward_kernel(%arg0: memref<56x16xf32, #tpu.memory_space<vmem>>, %arg1: memref<328x32xf32, #tpu.memory_space<vmem>>, %arg2: memref<2x32xf32, #tpu.memory_space<vmem>>, %arg3: memref<32x2xf32, #tpu.memory_space<vmem>>) attributes {dimension_semantics = [], scalar_prefetch = 0 : i64, scratch_operands = 0 : i64, tpu.core_type = #tpu.core_type<tc>} {
    %c0 = arith.constant 0 : index
    %c0_0 = arith.constant 0 : index
    %0 = vector.load %arg0[%c0, %c0_0] : memref<56x16xf32, #tpu.memory_space<vmem>>, vector<16x2xf32>
    %c16 = arith.constant 16 : index
    %c0_1 = arith.constant 0 : index
    %1 = vector.load %arg0[%c16, %c0_1] : memref<56x16xf32, #tpu.memory_space<vmem>>, vector<32x1xf32>
    %c48 = arith.constant 48 : index
    %c0_2 = arith.constant 0 : index
    %2 = vector.load %arg0[%c48, %c0_2] : memref<56x16xf32, #tpu.memory_space<vmem>>, vector<2x16xf32>
    %c0_3 = arith.constant 0 : index
    %c0_4 = arith.constant 0 : index
    %3 = vector.load %arg1[%c0_3, %c0_4] : memref<328x32xf32, #tpu.memory_space<vmem>>, vector<2x32xf32>
    %cst = arith.constant dense<0.000000e+00> : vector<16x32xf32>
    %4 = tpu.matmul %0, %3, %cst {dimension_numbers = #tpu.dot_dimension_numbers<[1], [0], [0], [1], [0, 0, 1, 1], [], []>} : vector<16x2xf32>, vector<2x32xf32>, vector<16x32xf32> -> vector<16x32xf32>
    %c8 = arith.constant 8 : index
    %c0_5 = arith.constant 0 : index
    %5 = vector.load %arg1[%c8, %c0_5] : memref<328x32xf32, #tpu.memory_space<vmem>>, vector<1x32xf32>
    %6 = vector.broadcast %5 : vector<1x32xf32> to vector<16x32xf32>
    %7 = arith.addf %4, %6 : vector<16x32xf32>
    %8 = arith.negf %7 : vector<16x32xf32>
    %9 = math.exp %8 : vector<16x32xf32>
    %cst_6 = arith.constant 1.000000e+00 : f32
    %10 = vector.broadcast %cst_6 : f32 to vector<16x32xf32>
    %11 = arith.addf %10, %9 : vector<16x32xf32>
    %12 = arith.divf %10, %11 : vector<16x32xf32>
    %c16_7 = arith.constant 16 : index
    %c0_8 = arith.constant 0 : index
    %13 = vector.load %arg1[%c16_7, %c0_8] : memref<328x32xf32, #tpu.memory_space<vmem>>, vector<32x32xf32>
    %cst_9 = arith.constant dense<0.000000e+00> : vector<16x32xf32>
    %14 = tpu.matmul %12, %13, %cst_9 {dimension_numbers = #tpu.dot_dimension_numbers<[1], [0], [0], [1], [0, 0, 1, 1], [], []>} : vector<16x32xf32>, vector<32x32xf32>, vector<16x32xf32> -> vector<16x32xf32>
    %c48_10 = arith.constant 48 : index
    %c0_11 = arith.constant 0 : index
    %15 = vector.load %arg1[%c48_10, %c0_11] : memref<328x32xf32, #tpu.memory_space<vmem>>, vector<1x32xf32>
    %16 = vector.broadcast %15 : vector<1x32xf32> to vector<16x32xf32>
    %17 = arith.addf %14, %16 : vector<16x32xf32>
    %18 = arith.negf %17 : vector<16x32xf32>
    %19 = math.exp %18 : vector<16x32xf32>
    %cst_12 = arith.constant 1.000000e+00 : f32
    %20 = vector.broadcast %cst_12 : f32 to vector<16x32xf32>
    %21 = arith.addf %20, %19 : vector<16x32xf32>
    %22 = arith.divf %20, %21 : vector<16x32xf32>
    %c56 = arith.constant 56 : index
    %c0_13 = arith.constant 0 : index
    %23 = vector.load %arg1[%c56, %c0_13] : memref<328x32xf32, #tpu.memory_space<vmem>>, vector<32x32xf32>
    %cst_14 = arith.constant dense<0.000000e+00> : vector<16x32xf32>
    %24 = tpu.matmul %22, %23, %cst_14 {dimension_numbers = #tpu.dot_dimension_numbers<[1], [0], [0], [1], [0, 0, 1, 1], [], []>} : vector<16x32xf32>, vector<32x32xf32>, vector<16x32xf32> -> vector<16x32xf32>
    %c88 = arith.constant 88 : index
    %c0_15 = arith.constant 0 : index
    %25 = vector.load %arg1[%c88, %c0_15] : memref<328x32xf32, #tpu.memory_space<vmem>>, vector<1x32xf32>
    %26 = vector.broadcast %25 : vector<1x32xf32> to vector<16x32xf32>
    %27 = arith.addf %24, %26 : vector<16x32xf32>
    %28 = tpu.iota {dimensions = array<i32: 0>} : vector<2x16xi32>
    %29 = tpu.iota {dimensions = array<i32: 1>} : vector<2x16xi32>
    %c8_i32 = arith.constant 8 : i32
    %30 = vector.broadcast %c8_i32 : i32 to vector<2x16xi32>
    %31 = arith.muli %28, %30 : vector<2x16xi32>
    %32 = arith.cmpi sge, %29, %31 : vector<2x16xi32>
    %c1_i32 = arith.constant 1 : i32
    %33 = vector.broadcast %c1_i32 : i32 to vector<2x16xi32>
    %34 = arith.addi %28, %33 : vector<2x16xi32>
    %c8_i32_16 = arith.constant 8 : i32
    %35 = vector.broadcast %c8_i32_16 : i32 to vector<2x16xi32>
    %36 = arith.muli %34, %35 : vector<2x16xi32>
    %37 = arith.cmpi slt, %29, %36 : vector<2x16xi32>
    %38 = arith.andi %32, %37 : vector<2x16xi1>
    %cst_17 = arith.constant 1.250000e-01 : f32
    %cst_18 = arith.constant 0.000000e+00 : f32
    %39 = vector.broadcast %cst_17 : f32 to vector<2x16xf32>
    %40 = vector.broadcast %cst_18 : f32 to vector<2x16xf32>
    %41 = arith.select %38, %39, %40 : vector<2x16xi1>, vector<2x16xf32>
    %cst_19 = arith.constant dense<0.000000e+00> : vector<2x32xf32>
    %42 = tpu.matmul %41, %27, %cst_19 {dimension_numbers = #tpu.dot_dimension_numbers<[1], [0], [0], [1], [0, 0, 1, 1], [], []>} : vector<2x16xf32>, vector<16x32xf32>, vector<2x32xf32> -> vector<2x32xf32>
    %c96 = arith.constant 96 : index
    %c0_20 = arith.constant 0 : index
    %43 = vector.load %arg1[%c96, %c0_20] : memref<328x32xf32, #tpu.memory_space<vmem>>, vector<32x32xf32>
    %cst_21 = arith.constant dense<0.000000e+00> : vector<2x32xf32>
    %44 = tpu.matmul %42, %43, %cst_21 {dimension_numbers = #tpu.dot_dimension_numbers<[1], [0], [0], [1], [0, 0, 1, 1], [], []>} : vector<2x32xf32>, vector<32x32xf32>, vector<2x32xf32> -> vector<2x32xf32>
    %c128 = arith.constant 128 : index
    %c0_22 = arith.constant 0 : index
    %45 = vector.load %arg1[%c128, %c0_22] : memref<328x32xf32, #tpu.memory_space<vmem>>, vector<1x32xf32>
    %46 = vector.broadcast %45 : vector<1x32xf32> to vector<2x32xf32>
    %47 = arith.addf %44, %46 : vector<2x32xf32>
    %cst_23 = arith.constant 0.000000e+00 : f32
    %48 = vector.broadcast %cst_23 : f32 to vector<2x32xf32>
    %49 = arith.maximumf %47, %48 : vector<2x32xf32>
    %c136 = arith.constant 136 : index
    %c0_24 = arith.constant 0 : index
    %50 = vector.load %arg1[%c136, %c0_24] : memref<328x32xf32, #tpu.memory_space<vmem>>, vector<32x32xf32>
    %cst_25 = arith.constant dense<0.000000e+00> : vector<2x32xf32>
    %51 = tpu.matmul %49, %50, %cst_25 {dimension_numbers = #tpu.dot_dimension_numbers<[1], [0], [0], [1], [0, 0, 1, 1], [], []>} : vector<2x32xf32>, vector<32x32xf32>, vector<2x32xf32> -> vector<2x32xf32>
    %c168 = arith.constant 168 : index
    %c0_26 = arith.constant 0 : index
    %52 = vector.load %arg1[%c168, %c0_26] : memref<328x32xf32, #tpu.memory_space<vmem>>, vector<1x32xf32>
    %53 = vector.broadcast %52 : vector<1x32xf32> to vector<2x32xf32>
    %54 = arith.addf %51, %53 : vector<2x32xf32>
    %55 = vector.extract_strided_slice %54 {offsets = [0, 0], sizes = [2, 16], strides = [1, 1]} : vector<2x32xf32> to vector<2x16xf32>
    %56 = vector.extract_strided_slice %54 {offsets = [0, 16], sizes = [2, 16], strides = [1, 1]} : vector<2x32xf32> to vector<2x16xf32>
    %57 = arith.negf %56 : vector<2x16xf32>
    %58 = math.exp %57 : vector<2x16xf32>
    %cst_27 = arith.constant 1.000000e+00 : f32
    %59 = vector.broadcast %cst_27 : f32 to vector<2x16xf32>
    %60 = arith.addf %59, %58 : vector<2x16xf32>
    %61 = arith.divf %59, %60 : vector<2x16xf32>
    %cst_28 = arith.constant 0.899999976 : f32
    %62 = vector.broadcast %cst_28 : f32 to vector<2x16xf32>
    %63 = arith.mulf %62, %61 : vector<2x16xf32>
    %cst_29 = arith.constant 1.000000e-01 : f32
    %64 = vector.broadcast %cst_29 : f32 to vector<2x16xf32>
    %65 = arith.addf %64, %63 : vector<2x16xf32>
    %66 = tpu.concatenate %55, %65 in 1 : vector<2x16xf32>, vector<2x16xf32> -> vector<2x32xf32>
    %c0_30 = arith.constant 0 : index
    %c0_31 = arith.constant 0 : index
    %67 = vector.load %arg2[%c0_30, %c0_31] : memref<2x32xf32, #tpu.memory_space<vmem>>, vector<2x32xf32>
    tpu.vector_store %arg2[%c0_30, %c0_31], %66 {strides = array<i32>} : memref<2x32xf32, #tpu.memory_space<vmem>>, vector<2x32xf32>,
    %68 = arith.mulf %65, %2 : vector<2x16xf32>
    %69 = arith.addf %55, %68 : vector<2x16xf32>
    %c184 = arith.constant 184 : index
    %c0_32 = arith.constant 0 : index
    %70 = vector.load %arg1[%c184, %c0_32] : memref<328x32xf32, #tpu.memory_space<vmem>>, vector<16x32xf32>
    %cst_33 = arith.constant dense<0.000000e+00> : vector<2x32xf32>
    %71 = tpu.matmul %69, %70, %cst_33 {dimension_numbers = #tpu.dot_dimension_numbers<[1], [0], [0], [1], [0, 0, 1, 1], [], []>} : vector<2x16xf32>, vector<16x32xf32>, vector<2x32xf32> -> vector<2x32xf32>
    %72 = tpu.iota {dimensions = array<i32: 0>} : vector<32x2xi32>
    %73 = tpu.iota {dimensions = array<i32: 1>} : vector<32x2xi32>
    %c16_i32 = arith.constant 16 : i32
    %74 = vector.broadcast %c16_i32 : i32 to vector<32x2xi32>
    %75 = arith.muli %73, %74 : vector<32x2xi32>
    %76 = arith.cmpi sge, %72, %75 : vector<32x2xi32>
    %c1_i32_34 = arith.constant 1 : i32
    %77 = vector.broadcast %c1_i32_34 : i32 to vector<32x2xi32>
    %78 = arith.addi %73, %77 : vector<32x2xi32>
    %c16_i32_35 = arith.constant 16 : i32
    %79 = vector.broadcast %c16_i32_35 : i32 to vector<32x2xi32>
    %80 = arith.muli %78, %79 : vector<32x2xi32>
    %81 = arith.cmpi slt, %72, %80 : vector<32x2xi32>
    %82 = arith.andi %76, %81 : vector<32x2xi1>
    %83 = arith.extui %82 : vector<32x2xi1> to vector<32x2xi32>
    %84 = arith.sitofp %83 : vector<32x2xi32> to vector<32x2xf32>
    %c176 = arith.constant 176 : index
    %c0_36 = arith.constant 0 : index
    %85 = vector.load %arg1[%c176, %c0_36] : memref<328x32xf32, #tpu.memory_space<vmem>>, vector<1x32xf32>
    %cst_37 = arith.constant dense<0.000000e+00> : vector<32x32xf32>
    %86 = tpu.matmul %1, %85, %cst_37 {dimension_numbers = #tpu.dot_dimension_numbers<[1], [0], [0], [1], [0, 0, 1, 1], [], []>} : vector<32x1xf32>, vector<1x32xf32>, vector<32x32xf32> -> vector<32x32xf32>
    %cst_38 = arith.constant dense<0.000000e+00> : vector<32x32xf32>
    %87 = tpu.matmul %84, %71, %cst_38 {dimension_numbers = #tpu.dot_dimension_numbers<[1], [0], [0], [1], [0, 0, 1, 1], [], []>} : vector<32x2xf32>, vector<2x32xf32>, vector<32x32xf32> -> vector<32x32xf32>
    %88 = arith.addf %86, %87 : vector<32x32xf32>
    %c200 = arith.constant 200 : index
    %c0_39 = arith.constant 0 : index
    %89 = vector.load %arg1[%c200, %c0_39] : memref<328x32xf32, #tpu.memory_space<vmem>>, vector<1x32xf32>
    %90 = vector.broadcast %89 : vector<1x32xf32> to vector<32x32xf32>
    %91 = arith.addf %88, %90 : vector<32x32xf32>
    %92 = arith.negf %91 : vector<32x32xf32>
    %93 = math.exp %92 : vector<32x32xf32>
    %cst_40 = arith.constant 1.000000e+00 : f32
    %94 = vector.broadcast %cst_40 : f32 to vector<32x32xf32>
    %95 = arith.addf %94, %93 : vector<32x32xf32>
    %96 = arith.divf %94, %95 : vector<32x32xf32>
    %c208 = arith.constant 208 : index
    %c0_41 = arith.constant 0 : index
    %97 = vector.load %arg1[%c208, %c0_41] : memref<328x32xf32, #tpu.memory_space<vmem>>, vector<32x32xf32>
    %cst_42 = arith.constant dense<0.000000e+00> : vector<32x32xf32>
    %98 = tpu.matmul %96, %97, %cst_42 {dimension_numbers = #tpu.dot_dimension_numbers<[1], [0], [0], [1], [0, 0, 1, 1], [], []>} : vector<32x32xf32>, vector<32x32xf32>, vector<32x32xf32> -> vector<32x32xf32>
    %c240 = arith.constant 240 : index
    %c0_43 = arith.constant 0 : index
    %99 = vector.load %arg1[%c240, %c0_43] : memref<328x32xf32, #tpu.memory_space<vmem>>, vector<1x32xf32>
    %100 = vector.broadcast %99 : vector<1x32xf32> to vector<32x32xf32>
    %101 = arith.addf %98, %100 : vector<32x32xf32>
    %102 = arith.negf %101 : vector<32x32xf32>
    %103 = math.exp %102 : vector<32x32xf32>
    %cst_44 = arith.constant 1.000000e+00 : f32
    %104 = vector.broadcast %cst_44 : f32 to vector<32x32xf32>
    %105 = arith.addf %104, %103 : vector<32x32xf32>
    %106 = arith.divf %104, %105 : vector<32x32xf32>
    %c248 = arith.constant 248 : index
    %c0_45 = arith.constant 0 : index
    %107 = vector.load %arg1[%c248, %c0_45] : memref<328x32xf32, #tpu.memory_space<vmem>>, vector<32x32xf32>
    %cst_46 = arith.constant dense<0.000000e+00> : vector<32x32xf32>
    %108 = tpu.matmul %106, %107, %cst_46 {dimension_numbers = #tpu.dot_dimension_numbers<[1], [0], [0], [1], [0, 0, 1, 1], [], []>} : vector<32x32xf32>, vector<32x32xf32>, vector<32x32xf32> -> vector<32x32xf32>
    %c280 = arith.constant 280 : index
    %c0_47 = arith.constant 0 : index
    %109 = vector.load %arg1[%c280, %c0_47] : memref<328x32xf32, #tpu.memory_space<vmem>>, vector<1x32xf32>
    %110 = vector.broadcast %109 : vector<1x32xf32> to vector<32x32xf32>
    %111 = arith.addf %108, %110 : vector<32x32xf32>
    %112 = arith.negf %111 : vector<32x32xf32>
    %113 = math.exp %112 : vector<32x32xf32>
    %cst_48 = arith.constant 1.000000e+00 : f32
    %114 = vector.broadcast %cst_48 : f32 to vector<32x32xf32>
    %115 = arith.addf %114, %113 : vector<32x32xf32>
    %116 = arith.divf %114, %115 : vector<32x32xf32>
    %c288 = arith.constant 288 : index
    %c0_49 = arith.constant 0 : index
    %117 = vector.load %arg1[%c288, %c0_49] : memref<328x32xf32, #tpu.memory_space<vmem>>, vector<32x2xf32>
    %cst_50 = arith.constant dense<0.000000e+00> : vector<32x2xf32>
    %118 = tpu.matmul %116, %117, %cst_50 {dimension_numbers = #tpu.dot_dimension_numbers<[1], [0], [0], [1], [0, 0, 1, 1], [], []>} : vector<32x32xf32>, vector<32x2xf32>, vector<32x2xf32> -> vector<32x2xf32>
    %c320 = arith.constant 320 : index
    %c0_51 = arith.constant 0 : index
    %119 = vector.load %arg1[%c320, %c0_51] : memref<328x32xf32, #tpu.memory_space<vmem>>, vector<1x2xf32>
    %120 = vector.broadcast %119 : vector<1x2xf32> to vector<32x2xf32>
    %121 = arith.addf %118, %120 : vector<32x2xf32>
    %122 = vector.extract_strided_slice %121 {offsets = [0, 0], sizes = [32, 1], strides = [1, 1]} : vector<32x2xf32> to vector<32x1xf32>
    %123 = vector.extract_strided_slice %121 {offsets = [0, 1], sizes = [32, 1], strides = [1, 1]} : vector<32x2xf32> to vector<32x1xf32>
    %cst_52 = arith.constant 0.000000e+00 : f32
    %124 = vector.broadcast %cst_52 : f32 to vector<32x1xf32>
    %125 = arith.maximumf %123, %124 : vector<32x1xf32>
    %126 = vector.broadcast %cst_52 : f32 to vector<32x1xf32>
    %127 = arith.subf %123, %126 : vector<32x1xf32>
    %128 = arith.cmpf one, %127, %127 : vector<32x1xf32>
    %129 = vector.broadcast %cst_52 : f32 to vector<32x1xf32>
    %130 = arith.addf %123, %129 : vector<32x1xf32>
    %131 = math.absf %127 : vector<32x1xf32>
    %cst_53 = arith.constant 0.000000e+00 : f32
    %132 = vector.broadcast %cst_53 : f32 to vector<32x1xf32>
    %133 = arith.subf %132, %131 : vector<32x1xf32>
    %134 = math.exp %133 : vector<32x1xf32>
    %135 = math.log1p %134 : vector<32x1xf32>
    %136 = arith.addf %125, %135 : vector<32x1xf32>
    %137 = arith.select %128, %130, %136 : vector<32x1xi1>, vector<32x1xf32>
    %cst_54 = arith.constant 0.899999976 : f32
    %138 = vector.broadcast %cst_54 : f32 to vector<32x1xf32>
    %139 = arith.mulf %138, %137 : vector<32x1xf32>
    %cst_55 = arith.constant 1.000000e-01 : f32
    %140 = vector.broadcast %cst_55 : f32 to vector<32x1xf32>
    %141 = arith.addf %140, %139 : vector<32x1xf32>
    %142 = tpu.concatenate %122, %141 in 1 : vector<32x1xf32>, vector<32x1xf32> -> vector<32x2xf32>
    %c0_56 = arith.constant 0 : index
    %c0_57 = arith.constant 0 : index
    %143 = vector.load %arg3[%c0_56, %c0_57] : memref<32x2xf32, #tpu.memory_space<vmem>>, vector<32x2xf32>
    tpu.vector_store %arg3[%c0_56, %c0_57], %142 {strides = array<i32>} : memref<32x2xf32, #tpu.memory_space<vmem>>, vector<32x2xf32>,
    return
  }
}

</mosaic_0001>

<llo_original>
// kernel: neural_process_apply.1
$region0: #{neural_process_apply.1}
  #allocation0 [shape = 'u32[]', space=smem, size = 0x4, offset = 0x4, fixed_abs, tag = 'smem constant byte address 0x4 - core index']
  #allocation1 [shape = 'u32[144,128]{1,0:T(1,128)}', space=vmem, size = 0x12000, scoped, tag = 'internal scratch']
  %s0 = inlined_call_operand.vmem [shape: f32[56,16], index: 0, kind: input, shape index: {}]
  %s1 = inlined_call_operand.vmem [shape: f32[328,32], index: 1, kind: input, shape index: {}]
  %s2 = inlined_call_operand.vmem [shape: f32[2,32], index: 2, kind: output, shape index: {0}]
  %s3 = inlined_call_operand.vmem [shape: f32[32,2], index: 3, kind: output, shape index: {1}]
  %4 = xla_tuple %s2, %s3
  %s5 = sld [smem:[#allocation0]]
  $region26: #{neural_process_apply.1} parent=0
    _
  %s7 = ssub.s32 1, %s5
  %s8 = scalar_select 0, %s7, %s5
  // Predicated region
  $region2: #{neural_process_apply.1} parent=0 // pred_check
    _
  $region3: #{neural_process_apply.1} parent=0 // pred_check_branch
    %10 = sbr.rel (0) target = $region5
  $region4: #{neural_process_apply.1} parent=0 // pred_region
    _
  $region5: #{neural_process_apply.1} parent=0 // pred_fallthru
    _
  // Predicated region
  $region6: #{neural_process_apply.1} parent=0 // pred_check
    _
  $region7: #{neural_process_apply.1} parent=0 // pred_check_branch
    %12 = sbr.rel (0) target = $region9
  $region8: #{neural_process_apply.1} parent=0 // pred_region
    _
  $region9: #{neural_process_apply.1} parent=0 // pred_fallthru
    _
  %v13 = vld [vmem:[%s0] sm:$0xff]
  %v14 = vld [vmem:[%s0 + $0x8] sm:$0xff]
  %v15 = vld [vmem:[%s0 + $0x10] sm:$0xff]
  %v16 = vld [vmem:[%s0 + $0x18] sm:$0xff]
  %v17 = vld [vmem:[%s0 + $0x20] sm:$0xff]
  %v18 = vld [vmem:[%s0 + $0x28] sm:$0xff]
  %v19 = vld [vmem:[%s0 + $0x30] sm:$0x3]
  %v20 = vld [vmem:[%s1] sm:$0x3]
  %v21 = vld [vmem:[%s1 + $0x8] sm:$0x1]
  %v22 = vlaneseq
  %v23 = vshrl.u32 %v22, 7
  %v24 = vsub.s32 0, %v23
  %v25 = vrot.slane %v21, %v24
  %vm26 = vcmask 15360
  %v28 = vsel %vm26, %v13, 0
  %v31 = vsel %vm26, %v14, 0
  %vm33 = vcmask 1041408
  %v35 = vsel %vm33, %v20, 0
  %37 = vmatprep.subr.mxu0 0.0
  %38 = vmatpush1.msra.mxu0 %v35
  %39 = vmatprep.subr.mxu0 0.0
  %40 = vmatpush1.msra.mxu0 0.0
  %41 = vmatprep.subr.mxu0 0.0
  %42 = vmatpush1.msra.mxu0 0.0
  %43 = vmatprep.subr.mxu0 0.0
  %44 = vmatpush1.msra.mxu0 0.0
  %45 = vmatprep.subr.mxu0 0.0
  %46 = vmatpush1.msra.mxu0 0.0
  %47 = vmatprep.subr.mxu0 0.0
  %48 = vmatpush1.msra.mxu0 0.0
  %49 = vmatprep.subr.mxu0 0.0
  %50 = vmatpush1.msra.mxu0 0.0
  %51 = vmatprep.subr.mxu0 0.0
  %52 = vmatpush1.msra.mxu0 0.0
  %53 = vmatprep.subr.mxu0 0.0
  %54 = vmatpush1.msra.mxu0 0.0
  %55 = vmatprep.subr.mxu0 0.0
  %56 = vmatpush1.msra.mxu0 0.0
  %57 = vmatprep.subr.mxu0 0.0
  %58 = vmatpush1.msra.mxu0 0.0
  %59 = vmatprep.subr.mxu0 0.0
  %60 = vmatpush1.msra.mxu0 0.0
  %61 = vmatprep.subr.mxu0 0.0
  %62 = vmatpush1.msra.mxu0 0.0
  %63 = vmatprep.subr.mxu0 0.0
  %64 = vmatpush1.msra.mxu0 0.0
  %65 = vmatprep.subr.mxu0 0.0
  %66 = vmatpush1.msra.mxu0 0.0
  %67 = vmatprep.subr.mxu0 0.0
  %68 = vmatpush1.msra.mxu0 0.0
  %69 = vmatprep.subr.mxu0 0.0
  %70 = vmatpush1.msra.mxu0 0.0
  %71 = vmatprep.subr.mxu0 0.0
  %72 = vmatpush1.msra.mxu0 0.0
  %73 = vmatprep.subr.mxu0 0.0
  %74 = vmatpush1.msra.mxu0 0.0
  %75 = vmatprep.subr.mxu0 0.0
  %76 = vmatpush1.msra.mxu0 0.0
  %77 = vmatprep.subr.mxu0 0.0
  %78 = vmatpush1.msra.mxu0 0.0
  %79 = vmatprep.subr.mxu0 0.0
  %80 = vmatpush1.msra.mxu0 0.0
  %81 = vmatprep.subr.mxu0 0.0
  %82 = vmatpush1.msra.mxu0 0.0
  %83 = vmatprep.subr.mxu0 0.0
  %84 = vmatpush1.msra.mxu0 0.0
  %85 = vmatprep.subr.mxu0 0.0
  %86 = vmatpush1.msra.mxu0 0.0
  %87 = vmatprep.subr.mxu0 0.0
  %88 = vmatpush1.msra.mxu0 0.0
  %89 = vmatprep.subr.mxu0 0.0
  %90 = vmatpush1.msra.mxu0 0.0
  %91 = vmatprep.subr.mxu0 0.0
  %92 = vmatpush1.msra.mxu0 0.0
  %93 = vmatprep.subr.mxu0 0.0
  %94 = vmatpush1.msra.mxu0 0.0
  %95 = vmatprep.subr.mxu0 0.0
  %96 = vmatpush1.msra.mxu0 0.0
  %97 = vmatprep.subr.mxu0 0.0
  %98 = vmatpush1.msra.mxu0 0.0
  %99 = vmatprep.subr.mxu0 0.0
  %100 = vmatpush1.msra.mxu0 0.0
  %101 = vmatprep.mubr.f32.mxu0 0.0
  %102 = vmatmul.mubr.f32.gmra.mrb[0].mxu0 %v28
  %v103 = vpop.f32.mrb[0].mxu0
  %v104 = vadd.f32 %v25, %v103
  %v105 = vpop.f32.mrb[0].mxu0
  %106 = vmatprep.mubr.f32.mxu0 0.0
  %107 = vmatmul.mubr.f32.gmra.mrb[0].mxu0 %v31
  %v108 = vpop.f32.mrb[0].mxu0
  %v109 = vadd.f32 %v25, %v108
  %v110 = vpop.f32.mrb[0].mxu0
  %111 = vdwg.mxu0
  %v112 = vxor.u32 %v104, 2147483648
  %v113 = vxor.u32 %v109, 2147483648
  %v114 = vmul.f32 %v112, 1.442695
  %v115 = vpow.pop %v114
  %v116 = vmul.f32 %v113, 1.442695
  %v117 = vpow.pop %v116
  %v118 = vadd.f32 %v115, 1.0
  %v119 = vadd.f32 %v117, 1.0
  %v120 = vrcp.pop %v118
  %v121 = vmul.f32 1.0, %v120
  %v122 = vrcp.pop %v119
  %v123 = vmul.f32 1.0, %v122
  %v124 = vld [vmem:[%s1 + $0x10] sm:$0xff]
  %v125 = vld [vmem:[%s1 + $0x18] sm:$0xff]
  %v126 = vld [vmem:[%s1 + $0x20] sm:$0xff]
  %v127 = vld [vmem:[%s1 + $0x28] sm:$0xff]
  %v128 = vld [vmem:[%s1 + $0x30] sm:$0x1]
  %v129 = vlaneseq
  %v130 = vshrl.u32 %v129, 7
  %v131 = vsub.s32 0, %v130
  %v132 = vrot.slane %v128, %v131
  %vm133 = vcmask 261120
  %v135 = vsel %vm133, %v121, 0
  %v138 = vsel %vm133, %v123, 0
  %140 = vmatprep.subr.mxu0 0.0
  %141 = vmatpush1.msra.mxu0 %v124
  %142 = vmatprep.subr.mxu0 0.0
  %143 = vmatpush1.msra.mxu0 %v125
  %144 = vmatprep.subr.mxu0 0.0
  %145 = vmatpush1.msra.mxu0 %v126
  %146 = vmatprep.subr.mxu0 0.0
  %147 = vmatpush1.msra.mxu0 %v127
  %148 = vmatprep.subr.mxu0 0.0
  %149 = vmatpush1.msra.mxu0 0.0
  %150 = vmatprep.subr.mxu0 0.0
  %151 = vmatpush1.msra.mxu0 0.0
  %152 = vmatprep.subr.mxu0 0.0
  %153 = vmatpush1.msra.mxu0 0.0
  %154 = vmatprep.subr.mxu0 0.0
  %155 = vmatpush1.msra.mxu0 0.0
  %156 = vmatprep.subr.mxu0 0.0
  %157 = vmatpush1.msra.mxu0 0.0
  %158 = vmatprep.subr.mxu0 0.0
  %159 = vmatpush1.msra.mxu0 0.0
  %160 = vmatprep.subr.mxu0 0.0
  %161 = vmatpush1.msra.mxu0 0.0
  %162 = vmatprep.subr.mxu0 0.0
  %163 = vmatpush1.msra.mxu0 0.0
  %164 = vmatprep.subr.mxu0 0.0
  %165 = vmatpush1.msra.mxu0 0.0
  %166 = vmatprep.subr.mxu0 0.0
  %167 = vmatpush1.msra.mxu0 0.0
  %168 = vmatprep.subr.mxu0 0.0
  %169 = vmatpush1.msra.mxu0 0.0
  %170 = vmatprep.subr.mxu0 0.0
  %171 = vmatpush1.msra.mxu0 0.0
  %172 = vmatprep.subr.mxu0 0.0
  %173 = vmatpush1.msra.mxu0 0.0
  %174 = vmatprep.subr.mxu0 0.0
  %175 = vmatpush1.msra.mxu0 0.0
  %176 = vmatprep.subr.mxu0 0.0
  %177 = vmatpush1.msra.mxu0 0.0
  %178 = vmatprep.subr.mxu0 0.0
  %179 = vmatpush1.msra.mxu0 0.0
  %180 = vmatprep.subr.mxu0 0.0
  %181 = vmatpush1.msra.mxu0 0.0
  %182 = vmatprep.subr.mxu0 0.0
  %183 = vmatpush1.msra.mxu0 0.0
  %184 = vmatprep.subr.mxu0 0.0
  %185 = vmatpush1.msra.mxu0 0.0
  %186 = vmatprep.subr.mxu0 0.0
  %187 = vmatpush1.msra.mxu0 0.0
  %188 = vmatprep.subr.mxu0 0.0
  %189 = vmatpush1.msra.mxu0 0.0
  %190 = vmatprep.subr.mxu0 0.0
  %191 = vmatpush1.msra.mxu0 0.0
  %192 = vmatprep.subr.mxu0 0.0
  %193 = vmatpush1.msra.mxu0 0.0
  %194 = vmatprep.subr.mxu0 0.0
  %195 = vmatpush1.msra.mxu0 0.0
  %196 = vmatprep.subr.mxu0 0.0
  %197 = vmatpush1.msra.mxu0 0.0
  %198 = vmatprep.subr.mxu0 0.0
  %199 = vmatpush1.msra.mxu0 0.0
  %200 = vmatprep.subr.mxu0 0.0
  %201 = vmatpush1.msra.mxu0 0.0
  %202 = vmatprep.subr.mxu0 0.0
  %203 = vmatpush1.msra.mxu0 0.0
  %204 = vmatprep.mubr.f32.mxu0 0.0
  %205 = vmatmul.mubr.f32.gmra.mrb[0].mxu0 %v135
  %v206 = vpop.f32.mrb[0].mxu0
  %v207 = vadd.f32 %v132, %v206
  %v208 = vpop.f32.mrb[0].mxu0
  %209 = vmatprep.mubr.f32.mxu0 0.0
  %210 = vmatmul.mubr.f32.gmra.mrb[0].mxu0 %v138
  %v211 = vpop.f32.mrb[0].mxu0
  %v212 = vadd.f32 %v132, %v211
  %v213 = vpop.f32.mrb[0].mxu0
  %214 = vdwg.mxu0
  %v215 = vxor.u32 %v207, 2147483648
  %v216 = vxor.u32 %v212, 2147483648
  %v217 = vmul.f32 %v215, 1.442695
  %v218 = vpow.pop %v217
  %v219 = vmul.f32 %v216, 1.442695
  %v220 = vpow.pop %v219
  %v221 = vadd.f32 %v218, 1.0
  %v222 = vadd.f32 %v220, 1.0
  %v223 = vrcp.pop %v221
  %v224 = vmul.f32 1.0, %v223
  %v225 = vrcp.pop %v222
  %v226 = vmul.f32 1.0, %v225
  %v227 = vld [vmem:[%s1 + $0x38] sm:$0xff]
  %v228 = vld [vmem:[%s1 + $0x40] sm:$0xff]
  %v229 = vld [vmem:[%s1 + $0x48] sm:$0xff]
  %v230 = vld [vmem:[%s1 + $0x50] sm:$0xff]
  %v231 = vld [vmem:[%s1 + $0x58] sm:$0x1]
  %v232 = vlaneseq
  %v233 = vshrl.u32 %v232, 7
  %v234 = vsub.s32 0, %v233
  %v235 = vrot.slane %v231, %v234
  %v237 = vsel %vm133, %v224, 0
  %v240 = vsel %vm133, %v226, 0
  %242 = vmatprep.subr.mxu0 0.0
  %243 = vmatpush1.msra.mxu0 %v227
  %244 = vmatprep.subr.mxu0 0.0
  %245 = vmatpush1.msra.mxu0 %v228
  %246 = vmatprep.subr.mxu0 0.0
  %247 = vmatpush1.msra.mxu0 %v229
  %248 = vmatprep.subr.mxu0 0.0
  %249 = vmatpush1.msra.mxu0 %v230
  %250 = vmatprep.subr.mxu0 0.0
  %251 = vmatpush1.msra.mxu0 0.0
  %252 = vmatprep.subr.mxu0 0.0
  %253 = vmatpush1.msra.mxu0 0.0
  %254 = vmatprep.subr.mxu0 0.0
  %255 = vmatpush1.msra.mxu0 0.0
  %256 = vmatprep.subr.mxu0 0.0
  %257 = vmatpush1.msra.mxu0 0.0
  %258 = vmatprep.subr.mxu0 0.0
  %259 = vmatpush1.msra.mxu0 0.0
  %260 = vmatprep.subr.mxu0 0.0
  %261 = vmatpush1.msra.mxu0 0.0
  %262 = vmatprep.subr.mxu0 0.0
  %263 = vmatpush1.msra.mxu0 0.0
  %264 = vmatprep.subr.mxu0 0.0
  %265 = vmatpush1.msra.mxu0 0.0
  %266 = vmatprep.subr.mxu0 0.0
  %267 = vmatpush1.msra.mxu0 0.0
  %268 = vmatprep.subr.mxu0 0.0
  %269 = vmatpush1.msra.mxu0 0.0
  %270 = vmatprep.subr.mxu0 0.0
  %271 = vmatpush1.msra.mxu0 0.0
  %272 = vmatprep.subr.mxu0 0.0
  %273 = vmatpush1.msra.mxu0 0.0
  %274 = vmatprep.subr.mxu0 0.0
  %275 = vmatpush1.msra.mxu0 0.0
  %276 = vmatprep.subr.mxu0 0.0
  %277 = vmatpush1.msra.mxu0 0.0
  %278 = vmatprep.subr.mxu0 0.0
  %279 = vmatpush1.msra.mxu0 0.0
  %280 = vmatprep.subr.mxu0 0.0
  %281 = vmatpush1.msra.mxu0 0.0
  %282 = vmatprep.subr.mxu0 0.0
  %283 = vmatpush1.msra.mxu0 0.0
  %284 = vmatprep.subr.mxu0 0.0
  %285 = vmatpush1.msra.mxu0 0.0
  %286 = vmatprep.subr.mxu0 0.0
  %287 = vmatpush1.msra.mxu0 0.0
  %288 = vmatprep.subr.mxu0 0.0
  %289 = vmatpush1.msra.mxu0 0.0
  %290 = vmatprep.subr.mxu0 0.0
  %291 = vmatpush1.msra.mxu0 0.0
  %292 = vmatprep.subr.mxu0 0.0
  %293 = vmatpush1.msra.mxu0 0.0
  %294 = vmatprep.subr.mxu0 0.0
  %295 = vmatpush1.msra.mxu0 0.0
  %296 = vmatprep.subr.mxu0 0.0
  %297 = vmatpush1.msra.mxu0 0.0
  %298 = vmatprep.subr.mxu0 0.0
  %299 = vmatpush1.msra.mxu0 0.0
  %300 = vmatprep.subr.mxu0 0.0
  %301 = vmatpush1.msra.mxu0 0.0
  %302 = vmatprep.subr.mxu0 0.0
  %303 = vmatpush1.msra.mxu0 0.0
  %304 = vmatprep.subr.mxu0 0.0
  %305 = vmatpush1.msra.mxu0 0.0
  %306 = vmatprep.mubr.f32.mxu0 0.0
  %307 = vmatmul.mubr.f32.gmra.mrb[0].mxu0 %v237
  %v308 = vpop.f32.mrb[0].mxu0
  %v309 = vadd.f32 %v235, %v308
  %v310 = vpop.f32.mrb[0].mxu0
  %311 = vmatprep.mubr.f32.mxu0 0.0
  %312 = vmatmul.mubr.f32.gmra.mrb[0].mxu0 %v240
  %v313 = vpop.f32.mrb[0].mxu0
  %v314 = vadd.f32 %v235, %v313
  %v315 = vpop.f32.mrb[0].mxu0
  %316 = vdwg.mxu0
  %v317 = vlaneseq
  %v318 = vshrl.u32 %v317, 7
  %v319 = vlaneseq
  %v320 = vand.u32 %v319, 127
  %v321 = vmul.u32 %v318, 8
  %vm322 = vcmp.ge.s32.totalorder %v320, %v321
  %v323 = vadd.s32 %v318, 1
  %v324 = vmul.u32 %v323, 8
  %vm325 = vcmp.lt.s32.totalorder %v320, %v324
  %vm326 = vmand %vm322, %vm325
  %v327 = vsel %vm326, 0.125, 0.0
  %vm328 = vcmask 130048
  %v330 = vsel %vm328, %v327, 0
  %332 = vmatprep.subr.mxu0 0.0
  %333 = vmatpush1.msra.mxu0 %v309
  %334 = vmatprep.subr.mxu0 0.0
  %335 = vmatpush1.msra.mxu0 %v314
  %336 = vmatprep.subr.mxu0 0.0
  %337 = vmatpush1.msra.mxu0 0.0
  %338 = vmatprep.subr.mxu0 0.0
  %339 = vmatpush1.msra.mxu0 0.0
  %340 = vmatprep.subr.mxu0 0.0
  %341 = vmatpush1.msra.mxu0 0.0
  %342 = vmatprep.subr.mxu0 0.0
  %343 = vmatpush1.msra.mxu0 0.0
  %344 = vmatprep.subr.mxu0 0.0
  %345 = vmatpush1.msra.mxu0 0.0
  %346 = vmatprep.subr.mxu0 0.0
  %347 = vmatpush1.msra.mxu0 0.0
  %348 = vmatprep.subr.mxu0 0.0
  %349 = vmatpush1.msra.mxu0 0.0
  %350 = vmatprep.subr.mxu0 0.0
  %351 = vmatpush1.msra.mxu0 0.0
  %352 = vmatprep.subr.mxu0 0.0
  %353 = vmatpush1.msra.mxu0 0.0
  %354 = vmatprep.subr.mxu0 0.0
  %355 = vmatpush1.msra.mxu0 0.0
  %356 = vmatprep.subr.mxu0 0.0
  %357 = vmatpush1.msra.mxu0 0.0
  %358 = vmatprep.subr.mxu0 0.0
  %359 = vmatpush1.msra.mxu0 0.0
  %360 = vmatprep.subr.mxu0 0.0
  %361 = vmatpush1.msra.mxu0 0.0
  %362 = vmatprep.subr.mxu0 0.0
  %363 = vmatpush1.msra.mxu0 0.0
  %364 = vmatprep.subr.mxu0 0.0
  %365 = vmatpush1.msra.mxu0 0.0
  %366 = vmatprep.subr.mxu0 0.0
  %367 = vmatpush1.msra.mxu0 0.0
  %368 = vmatprep.subr.mxu0 0.0
  %369 = vmatpush1.msra.mxu0 0.0
  %370 = vmatprep.subr.mxu0 0.0
  %371 = vmatpush1.msra.mxu0 0.0
  %372 = vmatprep.subr.mxu0 0.0
  %373 = vmatpush1.msra.mxu0 0.0
  %374 = vmatprep.subr.mxu0 0.0
  %375 = vmatpush1.msra.mxu0 0.0
  %376 = vmatprep.subr.mxu0 0.0
  %377 = vmatpush1.msra.mxu0 0.0
  %378 = vmatprep.subr.mxu0 0.0
  %379 = vmatpush1.msra.mxu0 0.0
  %380 = vmatprep.subr.mxu0 0.0
  %381 = vmatpush1.msra.mxu0 0.0
  %382 = vmatprep.subr.mxu0 0.0
  %383 = vmatpush1.msra.mxu0 0.0
  %384 = vmatprep.subr.mxu0 0.0
  %385 = vmatpush1.msra.mxu0 0.0
  %386 = vmatprep.subr.mxu0 0.0
  %387 = vmatpush1.msra.mxu0 0.0
  %388 = vmatprep.subr.mxu0 0.0
  %389 = vmatpush1.msra.mxu0 0.0
  %390 = vmatprep.subr.mxu0 0.0
  %391 = vmatpush1.msra.mxu0 0.0
  %392 = vmatprep.subr.mxu0 0.0
  %393 = vmatpush1.msra.mxu0 0.0
  %394 = vmatprep.subr.mxu0 0.0
  %395 = vmatpush1.msra.mxu0 0.0
  %396 = vmatprep.mubr.f32.mxu0 0.0
  %397 = vmatmul.mubr.f32.gmra.mrb[0].mxu0 %v330
  %v398 = vpop.f32.mrb[0].mxu0
  %v399 = vadd.f32 0.0, %v398
  %v400 = vpop.f32.mrb[0].mxu0
  %401 = vdwg.mxu0
  %v402 = vld [vmem:[%s1 + $0x60] sm:$0xff]
  %v403 = vld [vmem:[%s1 + $0x68] sm:$0xff]
  %v404 = vld [vmem:[%s1 + $0x70] sm:$0xff]
  %v405 = vld [vmem:[%s1 + $0x78] sm:$0xff]
  %v406 = vld [vmem:[%s1 + $0x80] sm:$0x1]
  %v407 = vlaneseq
  %v408 = vshrl.u32 %v407, 7
  %v409 = vsub.s32 0, %v408
  %v410 = vrot.slane %v406, %v409
  %v412 = vsel %vm133, %v399, 0
  %414 = vmatprep.subr.mxu0 0.0
  %415 = vmatpush1.msra.mxu0 %v402
  %416 = vmatprep.subr.mxu0 0.0
  %417 = vmatpush1.msra.mxu0 %v403
  %418 = vmatprep.subr.mxu0 0.0
  %419 = vmatpush1.msra.mxu0 %v404
  %420 = vmatprep.subr.mxu0 0.0
  %421 = vmatpush1.msra.mxu0 %v405
  %422 = vmatprep.subr.mxu0 0.0
  %423 = vmatpush1.msra.mxu0 0.0
  %424 = vmatprep.subr.mxu0 0.0
  %425 = vmatpush1.msra.mxu0 0.0
  %426 = vmatprep.subr.mxu0 0.0
  %427 = vmatpush1.msra.mxu0 0.0
  %428 = vmatprep.subr.mxu0 0.0
  %429 = vmatpush1.msra.mxu0 0.0
  %430 = vmatprep.subr.mxu0 0.0
  %431 = vmatpush1.msra.mxu0 0.0
  %432 = vmatprep.subr.mxu0 0.0
  %433 = vmatpush1.msra.mxu0 0.0
  %434 = vmatprep.subr.mxu0 0.0
  %435 = vmatpush1.msra.mxu0 0.0
  %436 = vmatprep.subr.mxu0 0.0
  %437 = vmatpush1.msra.mxu0 0.0
  %438 = vmatprep.subr.mxu0 0.0
  %439 = vmatpush1.msra.mxu0 0.0
  %440 = vmatprep.subr.mxu0 0.0
  %441 = vmatpush1.msra.mxu0 0.0
  %442 = vmatprep.subr.mxu0 0.0
  %443 = vmatpush1.msra.mxu0 0.0
  %444 = vmatprep.subr.mxu0 0.0
  %445 = vmatpush1.msra.mxu0 0.0
  %446 = vmatprep.subr.mxu0 0.0
  %447 = vmatpush1.msra.mxu0 0.0
  %448 = vmatprep.subr.mxu0 0.0
  %449 = vmatpush1.msra.mxu0 0.0
  %450 = vmatprep.subr.mxu0 0.0
  %451 = vmatpush1.msra.mxu0 0.0
  %452 = vmatprep.subr.mxu0 0.0
  %453 = vmatpush1.msra.mxu0 0.0
  %454 = vmatprep.subr.mxu0 0.0
  %455 = vmatpush1.msra.mxu0 0.0
  %456 = vmatprep.subr.mxu0 0.0
  %457 = vmatpush1.msra.mxu0 0.0
  %458 = vmatprep.subr.mxu0 0.0
  %459 = vmatpush1.msra.mxu0 0.0
  %460 = vmatprep.subr.mxu0 0.0
  %461 = vmatpush1.msra.mxu0 0.0
  %462 = vmatprep.subr.mxu0 0.0
  %463 = vmatpush1.msra.mxu0 0.0
  %464 = vmatprep.subr.mxu0 0.0
  %465 = vmatpush1.msra.mxu0 0.0
  %466 = vmatprep.subr.mxu0 0.0
  %467 = vmatpush1.msra.mxu0 0.0
  %468 = vmatprep.subr.mxu0 0.0
  %469 = vmatpush1.msra.mxu0 0.0
  %470 = vmatprep.subr.mxu0 0.0
  %471 = vmatpush1.msra.mxu0 0.0
  %472 = vmatprep.subr.mxu0 0.0
  %473 = vmatpush1.msra.mxu0 0.0
  %474 = vmatprep.subr.mxu0 0.0
  %475 = vmatpush1.msra.mxu0 0.0
  %476 = vmatprep.subr.mxu0 0.0
  %477 = vmatpush1.msra.mxu0 0.0
  %478 = vmatprep.mubr.f32.mxu0 0.0
  %479 = vmatmul.mubr.f32.gmra.mrb[0].mxu0 %v412
  %v480 = vpop.f32.mrb[0].mxu0
  %v481 = vadd.f32 %v410, %v480
  %v482 = vpop.f32.mrb[0].mxu0
  %483 = vdwg.mxu0
  %v484 = vmax.f32 %v481, 0.0
  %v485 = vld [vmem:[%s1 + $0x88] sm:$0xff]
  %v486 = vld [vmem:[%s1 + $0x90] sm:$0xff]
  %v487 = vld [vmem:[%s1 + $0x98] sm:$0xff]
  %v488 = vld [vmem:[%s1 + $0xa0] sm:$0xff]
  %v489 = vld [vmem:[%s1 + $0xa8] sm:$0x1]
  %v490 = vlaneseq
  %v491 = vshrl.u32 %v490, 7
  %v492 = vsub.s32 0, %v491
  %v493 = vrot.slane %v489, %v492
  %v495 = vsel %vm133, %v484, 0
  %497 = vmatprep.subr.mxu0 0.0
  %498 = vmatpush1.msra.mxu0 %v485
  %499 = vmatprep.subr.mxu0 0.0
  %500 = vmatpush1.msra.mxu0 %v486
  %501 = vmatprep.subr.mxu0 0.0
  %502 = vmatpush1.msra.mxu0 %v487
  %503 = vmatprep.subr.mxu0 0.0
  %504 = vmatpush1.msra.mxu0 %v488
  %505 = vmatprep.subr.mxu0 0.0
  %506 = vmatpush1.msra.mxu0 0.0
  %507 = vmatprep.subr.mxu0 0.0
  %508 = vmatpush1.msra.mxu0 0.0
  %509 = vmatprep.subr.mxu0 0.0
  %510 = vmatpush1.msra.mxu0 0.0
  %511 = vmatprep.subr.mxu0 0.0
  %512 = vmatpush1.msra.mxu0 0.0
  %513 = vmatprep.subr.mxu0 0.0
  %514 = vmatpush1.msra.mxu0 0.0
  %515 = vmatprep.subr.mxu0 0.0
  %516 = vmatpush1.msra.mxu0 0.0
  %517 = vmatprep.subr.mxu0 0.0
  %518 = vmatpush1.msra.mxu0 0.0
  %519 = vmatprep.subr.mxu0 0.0
  %520 = vmatpush1.msra.mxu0 0.0
  %521 = vmatprep.subr.mxu0 0.0
  %522 = vmatpush1.msra.mxu0 0.0
  %523 = vmatprep.subr.mxu0 0.0
  %524 = vmatpush1.msra.mxu0 0.0
  %525 = vmatprep.subr.mxu0 0.0
  %526 = vmatpush1.msra.mxu0 0.0
  %527 = vmatprep.subr.mxu0 0.0
  %528 = vmatpush1.msra.mxu0 0.0
  %529 = vmatprep.subr.mxu0 0.0
  %530 = vmatpush1.msra.mxu0 0.0
  %531 = vmatprep.subr.mxu0 0.0
  %532 = vmatpush1.msra.mxu0 0.0
  %533 = vmatprep.subr.mxu0 0.0
  %534 = vmatpush1.msra.mxu0 0.0
  %535 = vmatprep.subr.mxu0 0.0
  %536 = vmatpush1.msra.mxu0 0.0
  %537 = vmatprep.subr.mxu0 0.0
  %538 = vmatpush1.msra.mxu0 0.0
  %539 = vmatprep.subr.mxu0 0.0
  %540 = vmatpush1.msra.mxu0 0.0
  %541 = vmatprep.subr.mxu0 0.0
  %542 = vmatpush1.msra.mxu0 0.0
  %543 = vmatprep.subr.mxu0 0.0
  %544 = vmatpush1.msra.mxu0 0.0
  %545 = vmatprep.subr.mxu0 0.0
  %546 = vmatpush1.msra.mxu0 0.0
  %547 = vmatprep.subr.mxu0 0.0
  %548 = vmatpush1.msra.mxu0 0.0
  %549 = vmatprep.subr.mxu0 0.0
  %550 = vmatpush1.msra.mxu0 0.0
  %551 = vmatprep.subr.mxu0 0.0
  %552 = vmatpush1.msra.mxu0 0.0
  %553 = vmatprep.subr.mxu0 0.0
  %554 = vmatpush1.msra.mxu0 0.0
  %555 = vmatprep.subr.mxu0 0.0
  %556 = vmatpush1.msra.mxu0 0.0
  %557 = vmatprep.subr.mxu0 0.0
  %558 = vmatpush1.msra.mxu0 0.0
  %559 = vmatprep.subr.mxu0 0.0
  %560 = vmatpush1.msra.mxu0 0.0
  %561 = vmatprep.mubr.f32.mxu0 0.0
  %562 = vmatmul.mubr.f32.gmra.mrb[0].mxu0 %v495
  %v563 = vpop.f32.mrb[0].mxu0
  %v564 = vadd.f32 %v493, %v563
  %v565 = vpop.f32.mrb[0].mxu0
  %566 = vdwg.mxu0
  %v567 = vxor.u32 %v564, 2147483648
  %v568 = vmul.f32 %v567, 1.442695
  %v569 = vpow.pop %v568
  %v570 = vadd.f32 %v569, 1.0
  %v571 = vrcp.pop %v570
  %v572 = vmul.f32 1.0, %v571
  %v573 = vmul.f32 %v572, 0.9
  %v574 = vadd.f32 %v573, 0.1
  %v575 = vsel %vm328, %v564, %v574
  %vm576 = vcmask 254976
  %577 = vst.msk [vmem:[%s2] sm:$0x3] %vm576, %v575
  %579 = vrot.lane.b32.xlu0 %v19, 16
  %v580 = vpop.permute.xlu0 %579
  %v582 = vmul.f32 %v574, %v580
  %584 = vrot.lane.b32.xlu0 %v582, 112
  %v585 = vpop.permute.xlu0 %584
  %v587 = vadd.f32 %v564, %v585
  %v588 = vld [vmem:[%s1 + $0xb8] sm:$0xff]
  %v589 = vld [vmem:[%s1 + $0xc0] sm:$0xff]
  %v591 = vsel %vm328, %v587, 0
  %593 = vmatprep.subr.mxu0 0.0
  %594 = vmatpush1.msra.mxu0 %v588
  %595 = vmatprep.subr.mxu0 0.0
  %596 = vmatpush1.msra.mxu0 %v589
  %597 = vmatprep.subr.mxu0 0.0
  %598 = vmatpush1.msra.mxu0 0.0
  %599 = vmatprep.subr.mxu0 0.0
  %600 = vmatpush1.msra.mxu0 0.0
  %601 = vmatprep.subr.mxu0 0.0
  %602 = vmatpush1.msra.mxu0 0.0
  %603 = vmatprep.subr.mxu0 0.0
  %604 = vmatpush1.msra.mxu0 0.0
  %605 = vmatprep.subr.mxu0 0.0
  %606 = vmatpush1.msra.mxu0 0.0
  %607 = vmatprep.subr.mxu0 0.0
  %608 = vmatpush1.msra.mxu0 0.0
  %609 = vmatprep.subr.mxu0 0.0
  %610 = vmatpush1.msra.mxu0 0.0
  %611 = vmatprep.subr.mxu0 0.0
  %612 = vmatpush1.msra.mxu0 0.0
  %613 = vmatprep.subr.mxu0 0.0
  %614 = vmatpush1.msra.mxu0 0.0
  %615 = vmatprep.subr.mxu0 0.0
  %616 = vmatpush1.msra.mxu0 0.0
  %617 = vmatprep.subr.mxu0 0.0
  %618 = vmatpush1.msra.mxu0 0.0
  %619 = vmatprep.subr.mxu0 0.0
  %620 = vmatpush1.msra.mxu0 0.0
  %621 = vmatprep.subr.mxu0 0.0
  %622 = vmatpush1.msra.mxu0 0.0
  %623 = vmatprep.subr.mxu0 0.0
  %624 = vmatpush1.msra.mxu0 0.0
  %625 = vmatprep.subr.mxu0 0.0
  %626 = vmatpush1.msra.mxu0 0.0
  %627 = vmatprep.subr.mxu0 0.0
  %628 = vmatpush1.msra.mxu0 0.0
  %629 = vmatprep.subr.mxu0 0.0
  %630 = vmatpush1.msra.mxu0 0.0
  %631 = vmatprep.subr.mxu0 0.0
  %632 = vmatpush1.msra.mxu0 0.0
  %633 = vmatprep.subr.mxu0 0.0
  %634 = vmatpush1.msra.mxu0 0.0
  %635 = vmatprep.subr.mxu0 0.0
  %636 = vmatpush1.msra.mxu0 0.0
  %637 = vmatprep.subr.mxu0 0.0
  %638 = vmatpush1.msra.mxu0 0.0
  %639 = vmatprep.subr.mxu0 0.0
  %640 = vmatpush1.msra.mxu0 0.0
  %641 = vmatprep.subr.mxu0 0.0
  %642 = vmatpush1.msra.mxu0 0.0
  %643 = vmatprep.subr.mxu0 0.0
  %644 = vmatpush1.msra.mxu0 0.0
  %645 = vmatprep.subr.mxu0 0.0
  %646 = vmatpush1.msra.mxu0 0.0
  %647 = vmatprep.subr.mxu0 0.0
  %648 = vmatpush1.msra.mxu0 0.0
  %649 = vmatprep.subr.mxu0 0.0
  %650 = vmatpush1.msra.mxu0 0.0
  %651 = vmatprep.subr.mxu0 0.0
  %652 = vmatpush1.msra.mxu0 0.0
  %653 = vmatprep.subr.mxu0 0.0
  %654 = vmatpush1.msra.mxu0 0.0
  %655 = vmatprep.subr.mxu0 0.0
  %656 = vmatpush1.msra.mxu0 0.0
  %657 = vmatprep.mubr.f32.mxu0 0.0
  %658 = vmatmul.mubr.f32.gmra.mrb[0].mxu0 %v591
  %v659 = vpop.f32.mrb[0].mxu0
  %v660 = vadd.f32 0.0, %v659
  %v661 = vpop.f32.mrb[0].mxu0
  %662 = vdwg.mxu0
  %v663 = vadd.s32 %v318, 8
  %v664 = vadd.s32 %v318, 16
  %v665 = vadd.s32 %v318, 24
  %v666 = vmul.u32 %v320, 16
  %vm667 = vcmp.ge.s32.totalorder %v318, %v666
  %vm668 = vcmp.ge.s32.totalorder %v663, %v666
  %vm669 = vcmp.ge.s32.totalorder %v664, %v666
  %vm670 = vcmp.ge.s32.totalorder %v665, %v666
  %v671 = vadd.s32 %v320, 1
  %v672 = vmul.u32 %v671, 16
  %vm673 = vcmp.lt.s32.totalorder %v318, %v672
  %vm674 = vcmp.lt.s32.totalorder %v663, %v672
  %vm675 = vcmp.lt.s32.totalorder %v664, %v672
  %vm676 = vcmp.lt.s32.totalorder %v665, %v672
  %vm677 = vmand %vm667, %vm673
  %vm678 = vmand %vm668, %vm674
  %vm679 = vmand %vm669, %vm675
  %vm680 = vmand %vm670, %vm676
  %v681 = vsel %vm677, 1, 0
  %v682 = vsel %vm678, 1, 0
  %v683 = vsel %vm679, 1, 0
  %v684 = vsel %vm680, 1, 0
  %v685 = vcvt.s32.f32 %v681
  %v686 = vcvt.s32.f32 %v682
  %v687 = vcvt.s32.f32 %v683
  %v688 = vcvt.s32.f32 %v684
  %v689 = vld [vmem:[%s1 + $0xb0] sm:$0x1]
  %v691 = vsel %vm26, %v685, 0
  %v694 = vsel %vm26, %v686, 0
  %v697 = vsel %vm26, %v687, 0
  %v700 = vsel %vm26, %v688, 0
  %v703 = vsel %vm33, %v660, 0
  %705 = vmatprep.subr.mxu0 0.0
  %706 = vmatpush1.msra.mxu0 %v703
  %707 = vmatprep.subr.mxu0 0.0
  %708 = vmatpush1.msra.mxu0 0.0
  %709 = vmatprep.subr.mxu0 0.0
  %710 = vmatpush1.msra.mxu0 0.0
  %711 = vmatprep.subr.mxu0 0.0
  %712 = vmatpush1.msra.mxu0 0.0
  %713 = vmatprep.subr.mxu0 0.0
  %714 = vmatpush1.msra.mxu0 0.0
  %715 = vmatprep.subr.mxu0 0.0
  %716 = vmatpush1.msra.mxu0 0.0
  %717 = vmatprep.subr.mxu0 0.0
  %718 = vmatpush1.msra.mxu0 0.0
  %719 = vmatprep.subr.mxu0 0.0
  %720 = vmatpush1.msra.mxu0 0.0
  %721 = vmatprep.subr.mxu0 0.0
  %722 = vmatpush1.msra.mxu0 0.0
  %723 = vmatprep.subr.mxu0 0.0
  %724 = vmatpush1.msra.mxu0 0.0
  %725 = vmatprep.subr.mxu0 0.0
  %726 = vmatpush1.msra.mxu0 0.0
  %727 = vmatprep.subr.mxu0 0.0
  %728 = vmatpush1.msra.mxu0 0.0
  %729 = vmatprep.subr.mxu0 0.0
  %730 = vmatpush1.msra.mxu0 0.0
  %731 = vmatprep.subr.mxu0 0.0
  %732 = vmatpush1.msra.mxu0 0.0
  %733 = vmatprep.subr.mxu0 0.0
  %734 = vmatpush1.msra.mxu0 0.0
  %735 = vmatprep.subr.mxu0 0.0
  %736 = vmatpush1.msra.mxu0 0.0
  %737 = vmatprep.subr.mxu0 0.0
  %738 = vmatpush1.msra.mxu0 0.0
  %739 = vmatprep.subr.mxu0 0.0
  %740 = vmatpush1.msra.mxu0 0.0
  %741 = vmatprep.subr.mxu0 0.0
  %742 = vmatpush1.msra.mxu0 0.0
  %743 = vmatprep.subr.mxu0 0.0
  %744 = vmatpush1.msra.mxu0 0.0
  %745 = vmatprep.subr.mxu0 0.0
  %746 = vmatpush1.msra.mxu0 0.0
  %747 = vmatprep.subr.mxu0 0.0
  %748 = vmatpush1.msra.mxu0 0.0
  %749 = vmatprep.subr.mxu0 0.0
  %750 = vmatpush1.msra.mxu0 0.0
  %751 = vmatprep.subr.mxu0 0.0
  %752 = vmatpush1.msra.mxu0 0.0
  %753 = vmatprep.subr.mxu0 0.0
  %754 = vmatpush1.msra.mxu0 0.0
  %755 = vmatprep.subr.mxu0 0.0
  %756 = vmatpush1.msra.mxu0 0.0
  %757 = vmatprep.subr.mxu0 0.0
  %758 = vmatpush1.msra.mxu0 0.0
  %759 = vmatprep.subr.mxu0 0.0
  %760 = vmatpush1.msra.mxu0 0.0
  %761 = vmatprep.subr.mxu0 0.0
  %762 = vmatpush1.msra.mxu0 0.0
  %763 = vmatprep.subr.mxu0 0.0
  %764 = vmatpush1.msra.mxu0 0.0
  %765 = vmatprep.subr.mxu0 0.0
  %766 = vmatpush1.msra.mxu0 0.0
  %767 = vmatprep.subr.mxu0 0.0
  %768 = vmatpush1.msra.mxu0 0.0
  %769 = vmatprep.mubr.f32.mxu0 0.0
  %770 = vmatmul.mubr.f32.gmra.mrb[0].mxu0 %v691
  %v771 = vpop.f32.mrb[0].mxu0
  %v772 = vadd.f32 0.0, %v771
  %v773 = vpop.f32.mrb[0].mxu0
  %774 = vmatprep.mubr.f32.mxu0 0.0
  %775 = vmatmul.mubr.f32.gmra.mrb[0].mxu0 %v694
  %v776 = vpop.f32.mrb[0].mxu0
  %v777 = vadd.f32 0.0, %v776
  %v778 = vpop.f32.mrb[0].mxu0
  %779 = vmatprep.mubr.f32.mxu0 0.0
  %780 = vmatmul.mubr.f32.gmra.mrb[0].mxu0 %v697
  %v781 = vpop.f32.mrb[0].mxu0
  %v782 = vadd.f32 0.0, %v781
  %v783 = vpop.f32.mrb[0].mxu0
  %784 = vmatprep.mubr.f32.mxu0 0.0
  %785 = vmatmul.mubr.f32.gmra.mrb[0].mxu0 %v700
  %v786 = vpop.f32.mrb[0].mxu0
  %v787 = vadd.f32 0.0, %v786
  %v788 = vpop.f32.mrb[0].mxu0
  %789 = vdwg.mxu0
  %vm790 = vcmask 7168
  %v792 = vsel %vm790, %v15, 0
  %v795 = vsel %vm790, %v16, 0
  %v798 = vsel %vm790, %v17, 0
  %v801 = vsel %vm790, %v18, 0
  %vm803 = vcmask 1040384
  %v805 = vsel %vm803, %v689, 0
  %807 = vmatprep.subr.mxu0 0.0
  %808 = vmatpush1.msra.mxu0 %v805
  %809 = vmatprep.subr.mxu0 0.0
  %810 = vmatpush1.msra.mxu0 0.0
  %811 = vmatprep.subr.mxu0 0.0
  %812 = vmatpush1.msra.mxu0 0.0
  %813 = vmatprep.subr.mxu0 0.0
  %814 = vmatpush1.msra.mxu0 0.0
  %815 = vmatprep.subr.mxu0 0.0
  %816 = vmatpush1.msra.mxu0 0.0
  %817 = vmatprep.subr.mxu0 0.0
  %818 = vmatpush1.msra.mxu0 0.0
  %819 = vmatprep.subr.mxu0 0.0
  %820 = vmatpush1.msra.mxu0 0.0
  %821 = vmatprep.subr.mxu0 0.0
  %822 = vmatpush1.msra.mxu0 0.0
  %823 = vmatprep.subr.mxu0 0.0
  %824 = vmatpush1.msra.mxu0 0.0
  %825 = vmatprep.subr.mxu0 0.0
  %826 = vmatpush1.msra.mxu0 0.0
  %827 = vmatprep.subr.mxu0 0.0
  %828 = vmatpush1.msra.mxu0 0.0
  %829 = vmatprep.subr.mxu0 0.0
  %830 = vmatpush1.msra.mxu0 0.0
  %831 = vmatprep.subr.mxu0 0.0
  %832 = vmatpush1.msra.mxu0 0.0
  %833 = vmatprep.subr.mxu0 0.0
  %834 = vmatpush1.msra.mxu0 0.0
  %835 = vmatprep.subr.mxu0 0.0
  %836 = vmatpush1.msra.mxu0 0.0
  %837 = vmatprep.subr.mxu0 0.0
  %838 = vmatpush1.msra.mxu0 0.0
  %839 = vmatprep.subr.mxu0 0.0
  %840 = vmatpush1.msra.mxu0 0.0
  %841 = vmatprep.subr.mxu0 0.0
  %842 = vmatpush1.msra.mxu0 0.0
  %843 = vmatprep.subr.mxu0 0.0
  %844 = vmatpush1.msra.mxu0 0.0
  %845 = vmatprep.subr.mxu0 0.0
  %846 = vmatpush1.msra.mxu0 0.0
  %847 = vmatprep.subr.mxu0 0.0
  %848 = vmatpush1.msra.mxu0 0.0
  %849 = vmatprep.subr.mxu0 0.0
  %850 = vmatpush1.msra.mxu0 0.0
  %851 = vmatprep.subr.mxu0 0.0
  %852 = vmatpush1.msra.mxu0 0.0
  %853 = vmatprep.subr.mxu0 0.0
  %854 = vmatpush1.msra.mxu0 0.0
  %855 = vmatprep.subr.mxu0 0.0
  %856 = vmatpush1.msra.mxu0 0.0
  %857 = vmatprep.subr.mxu0 0.0
  %858 = vmatpush1.msra.mxu0 0.0
  %859 = vmatprep.subr.mxu0 0.0
  %860 = vmatpush1.msra.mxu0 0.0
  %861 = vmatprep.subr.mxu0 0.0
  %862 = vmatpush1.msra.mxu0 0.0
  %863 = vmatprep.subr.mxu0 0.0
  %864 = vmatpush1.msra.mxu0 0.0
  %865 = vmatprep.subr.mxu0 0.0
  %866 = vmatpush1.msra.mxu0 0.0
  %867 = vmatprep.subr.mxu0 0.0
  %868 = vmatpush1.msra.mxu0 0.0
  %869 = vmatprep.subr.mxu0 0.0
  %870 = vmatpush1.msra.mxu0 0.0
  %871 = vmatprep.mubr.f32.mxu0 0.0
  %872 = vmatmul.mubr.f32.gmra.mrb[0].mxu0 %v792
  %v873 = vpop.f32.mrb[0].mxu0
  %v874 = vadd.f32 %v772, %v873
  %v875 = vpop.f32.mrb[0].mxu0
  %876 = vmatprep.mubr.f32.mxu0 0.0
  %877 = vmatmul.mubr.f32.gmra.mrb[0].mxu0 %v795
  %v878 = vpop.f32.mrb[0].mxu0
  %v879 = vadd.f32 %v777, %v878
  %v880 = vpop.f32.mrb[0].mxu0
  %881 = vmatprep.mubr.f32.mxu0 0.0
  %882 = vmatmul.mubr.f32.gmra.mrb[0].mxu0 %v798
  %v883 = vpop.f32.mrb[0].mxu0
  %v884 = vadd.f32 %v782, %v883
  %v885 = vpop.f32.mrb[0].mxu0
  %886 = vmatprep.mubr.f32.mxu0 0.0
  %887 = vmatmul.mubr.f32.gmra.mrb[0].mxu0 %v801
  %v888 = vpop.f32.mrb[0].mxu0
  %v889 = vadd.f32 %v787, %v888
  %v890 = vpop.f32.mrb[0].mxu0
  %891 = vdwg.mxu0
  %v892 = vld [vmem:[%s1 + $0xc8] sm:$0x1]
  %v893 = vlaneseq
  %v894 = vshrl.u32 %v893, 7
  %v895 = vsub.s32 0, %v894
  %v896 = vrot.slane %v892, %v895
  %v897 = vadd.f32 %v874, %v896
  %v898 = vadd.f32 %v879, %v896
  %v899 = vadd.f32 %v884, %v896
  %v900 = vadd.f32 %v889, %v896
  %v901 = vxor.u32 %v897, 2147483648
  %v902 = vxor.u32 %v898, 2147483648
  %v903 = vxor.u32 %v899, 2147483648
  %v904 = vxor.u32 %v900, 2147483648
  %v905 = vmul.f32 %v901, 1.442695
  %v906 = vpow.pop %v905
  %v907 = vmul.f32 %v902, 1.442695
  %v908 = vpow.pop %v907
  %v909 = vmul.f32 %v903, 1.442695
  %v910 = vpow.pop %v909
  %v911 = vmul.f32 %v904, 1.442695
  %v912 = vpow.pop %v911
  %v913 = vadd.f32 %v906, 1.0
  %v914 = vadd.f32 %v908, 1.0
  %v915 = vadd.f32 %v910, 1.0
  %v916 = vadd.f32 %v912, 1.0
  %v917 = vrcp.pop %v913
  %v918 = vmul.f32 1.0, %v917
  %v919 = vrcp.pop %v914
  %v920 = vmul.f32 1.0, %v919
  %v921 = vrcp.pop %v915
  %v922 = vmul.f32 1.0, %v921
  %v923 = vrcp.pop %v916
  %v924 = vmul.f32 1.0, %v923
  %v925 = vld [vmem:[%s1 + $0xd0] sm:$0xff]
  %v926 = vld [vmem:[%s1 + $0xd8] sm:$0xff]
  %v927 = vld [vmem:[%s1 + $0xe0] sm:$0xff]
  %v928 = vld [vmem:[%s1 + $0xe8] sm:$0xff]
  %v929 = vld [vmem:[%s1 + $0xf0] sm:$0x1]
  %v930 = vlaneseq
  %v931 = vshrl.u32 %v930, 7
  %v932 = vsub.s32 0, %v931
  %v933 = vrot.slane %v929, %v932
  %v935 = vsel %vm133, %v918, 0
  %v938 = vsel %vm133, %v920, 0
  %v941 = vsel %vm133, %v922, 0
  %v944 = vsel %vm133, %v924, 0
  %946 = vmatprep.subr.mxu0 0.0
  %947 = vmatpush1.msra.mxu0 %v925
  %948 = vmatprep.subr.mxu0 0.0
  %949 = vmatpush1.msra.mxu0 %v926
  %950 = vmatprep.subr.mxu0 0.0
  %951 = vmatpush1.msra.mxu0 %v927
  %952 = vmatprep.subr.mxu0 0.0
  %953 = vmatpush1.msra.mxu0 %v928
  %954 = vmatprep.subr.mxu0 0.0
  %955 = vmatpush1.msra.mxu0 0.0
  %956 = vmatprep.subr.mxu0 0.0
  %957 = vmatpush1.msra.mxu0 0.0
  %958 = vmatprep.subr.mxu0 0.0
  %959 = vmatpush1.msra.mxu0 0.0
  %960 = vmatprep.subr.mxu0 0.0
  %961 = vmatpush1.msra.mxu0 0.0
  %962 = vmatprep.subr.mxu0 0.0
  %963 = vmatpush1.msra.mxu0 0.0
  %964 = vmatprep.subr.mxu0 0.0
  %965 = vmatpush1.msra.mxu0 0.0
  %966 = vmatprep.subr.mxu0 0.0
  %967 = vmatpush1.msra.mxu0 0.0
  %968 = vmatprep.subr.mxu0 0.0
  %969 = vmatpush1.msra.mxu0 0.0
  %970 = vmatprep.subr.mxu0 0.0
  %971 = vmatpush1.msra.mxu0 0.0
  %972 = vmatprep.subr.mxu0 0.0
  %973 = vmatpush1.msra.mxu0 0.0
  %974 = vmatprep.subr.mxu0 0.0
  %975 = vmatpush1.msra.mxu0 0.0
  %976 = vmatprep.subr.mxu0 0.0
  %977 = vmatpush1.msra.mxu0 0.0
  %978 = vmatprep.subr.mxu0 0.0
  %979 = vmatpush1.msra.mxu0 0.0
  %980 = vmatprep.subr.mxu0 0.0
  %981 = vmatpush1.msra.mxu0 0.0
  %982 = vmatprep.subr.mxu0 0.0
  %983 = vmatpush1.msra.mxu0 0.0
  %984 = vmatprep.subr.mxu0 0.0
  %985 = vmatpush1.msra.mxu0 0.0
  %986 = vmatprep.subr.mxu0 0.0
  %987 = vmatpush1.msra.mxu0 0.0
  %988 = vmatprep.subr.mxu0 0.0
  %989 = vmatpush1.msra.mxu0 0.0
  %990 = vmatprep.subr.mxu0 0.0
  %991 = vmatpush1.msra.mxu0 0.0
  %992 = vmatprep.subr.mxu0 0.0
  %993 = vmatpush1.msra.mxu0 0.0
  %994 = vmatprep.subr.mxu0 0.0
  %995 = vmatpush1.msra.mxu0 0.0
  %996 = vmatprep.subr.mxu0 0.0
  %997 = vmatpush1.msra.mxu0 0.0
  %998 = vmatprep.subr.mxu0 0.0
  %999 = vmatpush1.msra.mxu0 0.0
  %1000 = vmatprep.subr.mxu0 0.0
  %1001 = vmatpush1.msra.mxu0 0.0
  %1002 = vmatprep.subr.mxu0 0.0
  %1003 = vmatpush1.msra.mxu0 0.0
  %1004 = vmatprep.subr.mxu0 0.0
  %1005 = vmatpush1.msra.mxu0 0.0
  %1006 = vmatprep.subr.mxu0 0.0
  %1007 = vmatpush1.msra.mxu0 0.0
  %1008 = vmatprep.subr.mxu0 0.0
  %1009 = vmatpush1.msra.mxu0 0.0
  %1010 = vmatprep.mubr.f32.mxu0 0.0
  %1011 = vmatmul.mubr.f32.gmra.mrb[0].mxu0 %v935
  %v1012 = vpop.f32.mrb[0].mxu0
  %v1013 = vadd.f32 %v933, %v1012
  %v1014 = vpop.f32.mrb[0].mxu0
  %1015 = vmatprep.mubr.f32.mxu0 0.0
  %1016 = vmatmul.mubr.f32.gmra.mrb[0].mxu0 %v938
  %v1017 = vpop.f32.mrb[0].mxu0
  %v1018 = vadd.f32 %v933, %v1017
  %v1019 = vpop.f32.mrb[0].mxu0
  %1020 = vmatprep.mubr.f32.mxu0 0.0
  %1021 = vmatmul.mubr.f32.gmra.mrb[0].mxu0 %v941
  %v1022 = vpop.f32.mrb[0].mxu0
  %v1023 = vadd.f32 %v933, %v1022
  %v1024 = vpop.f32.mrb[0].mxu0
  %1025 = vmatprep.mubr.f32.mxu0 0.0
  %1026 = vmatmul.mubr.f32.gmra.mrb[0].mxu0 %v944
  %v1027 = vpop.f32.mrb[0].mxu0
  %v1028 = vadd.f32 %v933, %v1027
  %v1029 = vpop.f32.mrb[0].mxu0
  %1030 = vdwg.mxu0
  %v1031 = vxor.u32 %v1013, 2147483648
  %v1032 = vxor.u32 %v1018, 2147483648
  %v1033 = vxor.u32 %v1023, 2147483648
  %v1034 = vxor.u32 %v1028, 2147483648
  %v1035 = vmul.f32 %v1031, 1.442695
  %v1036 = vpow.pop %v1035
  %v1037 = vmul.f32 %v1032, 1.442695
  %v1038 = vpow.pop %v1037
  %v1039 = vmul.f32 %v1033, 1.442695
  %v1040 = vpow.pop %v1039
  %v1041 = vmul.f32 %v1034, 1.442695
  %v1042 = vpow.pop %v1041
  %v1043 = vadd.f32 %v1036, 1.0
  %v1044 = vadd.f32 %v1038, 1.0
  %v1045 = vadd.f32 %v1040, 1.0
  %v1046 = vadd.f32 %v1042, 1.0
  %v1047 = vrcp.pop %v1043
  %v1048 = vmul.f32 1.0, %v1047
  %v1049 = vrcp.pop %v1044
  %v1050 = vmul.f32 1.0, %v1049
  %v1051 = vrcp.pop %v1045
  %v1052 = vmul.f32 1.0, %v1051
  %v1053 = vrcp.pop %v1046
  %v1054 = vmul.f32 1.0, %v1053
  %v1055 = vld [vmem:[%s1 + $0xf8] sm:$0xff]
  %v1056 = vld [vmem:[%s1 + $0x100] sm:$0xff]
  %v1057 = vld [vmem:[%s1 + $0x108] sm:$0xff]
  %v1058 = vld [vmem:[%s1 + $0x110] sm:$0xff]
  %v1059 = vld [vmem:[%s1 + $0x118] sm:$0x1]
  %v1060 = vlaneseq
  %v1061 = vshrl.u32 %v1060, 7
  %v1062 = vsub.s32 0, %v1061
  %v1063 = vrot.slane %v1059, %v1062
  %v1065 = vsel %vm133, %v1048, 0
  %v1068 = vsel %vm133, %v1050, 0
  %v1071 = vsel %vm133, %v1052, 0
  %v1074 = vsel %vm133, %v1054, 0
  %1076 = vmatprep.subr.mxu0 0.0
  %1077 = vmatpush1.msra.mxu0 %v1055
  %1078 = vmatprep.subr.mxu0 0.0
  %1079 = vmatpush1.msra.mxu0 %v1056
  %1080 = vmatprep.subr.mxu0 0.0
  %1081 = vmatpush1.msra.mxu0 %v1057
  %1082 = vmatprep.subr.mxu0 0.0
  %1083 = vmatpush1.msra.mxu0 %v1058
  %1084 = vmatprep.subr.mxu0 0.0
  %1085 = vmatpush1.msra.mxu0 0.0
  %1086 = vmatprep.subr.mxu0 0.0
  %1087 = vmatpush1.msra.mxu0 0.0
  %1088 = vmatprep.subr.mxu0 0.0
  %1089 = vmatpush1.msra.mxu0 0.0
  %1090 = vmatprep.subr.mxu0 0.0
  %1091 = vmatpush1.msra.mxu0 0.0
  %1092 = vmatprep.subr.mxu0 0.0
  %1093 = vmatpush1.msra.mxu0 0.0
  %1094 = vmatprep.subr.mxu0 0.0
  %1095 = vmatpush1.msra.mxu0 0.0
  %1096 = vmatprep.subr.mxu0 0.0
  %1097 = vmatpush1.msra.mxu0 0.0
  %1098 = vmatprep.subr.mxu0 0.0
  %1099 = vmatpush1.msra.mxu0 0.0
  %1100 = vmatprep.subr.mxu0 0.0
  %1101 = vmatpush1.msra.mxu0 0.0
  %1102 = vmatprep.subr.mxu0 0.0
  %1103 = vmatpush1.msra.mxu0 0.0
  %1104 = vmatprep.subr.mxu0 0.0
  %1105 = vmatpush1.msra.mxu0 0.0
  %1106 = vmatprep.subr.mxu0 0.0
  %1107 = vmatpush1.msra.mxu0 0.0
  %1108 = vmatprep.subr.mxu0 0.0
  %1109 = vmatpush1.msra.mxu0 0.0
  %1110 = vmatprep.subr.mxu0 0.0
  %1111 = vmatpush1.msra.mxu0 0.0
  %1112 = vmatprep.subr.mxu0 0.0
  %1113 = vmatpush1.msra.mxu0 0.0
  %1114 = vmatprep.subr.mxu0 0.0
  %1115 = vmatpush1.msra.mxu0 0.0
  %1116 = vmatprep.subr.mxu0 0.0
  %1117 = vmatpush1.msra.mxu0 0.0
  %1118 = vmatprep.subr.mxu0 0.0
  %1119 = vmatpush1.msra.mxu0 0.0
  %1120 = vmatprep.subr.mxu0 0.0
  %1121 = vmatpush1.msra.mxu0 0.0
  %1122 = vmatprep.subr.mxu0 0.0
  %1123 = vmatpush1.msra.mxu0 0.0
  %1124 = vmatprep.subr.mxu0 0.0
  %1125 = vmatpush1.msra.mxu0 0.0
  %1126 = vmatprep.subr.mxu0 0.0
  %1127 = vmatpush1.msra.mxu0 0.0
  %1128 = vmatprep.subr.mxu0 0.0
  %1129 = vmatpush1.msra.mxu0 0.0
  %1130 = vmatprep.subr.mxu0 0.0
  %1131 = vmatpush1.msra.mxu0 0.0
  %1132 = vmatprep.subr.mxu0 0.0
  %1133 = vmatpush1.msra.mxu0 0.0
  %1134 = vmatprep.subr.mxu0 0.0
  %1135 = vmatpush1.msra.mxu0 0.0
  %1136 = vmatprep.subr.mxu0 0.0
  %1137 = vmatpush1.msra.mxu0 0.0
  %1138 = vmatprep.subr.mxu0 0.0
  %1139 = vmatpush1.msra.mxu0 0.0
  %1140 = vmatprep.mubr.f32.mxu0 0.0
  %1141 = vmatmul.mubr.f32.gmra.mrb[0].mxu0 %v1065
  %v1142 = vpop.f32.mrb[0].mxu0
  %v1143 = vadd.f32 %v1063, %v1142
  %v1144 = vpop.f32.mrb[0].mxu0
  %1145 = vmatprep.mubr.f32.mxu0 0.0
  %1146 = vmatmul.mubr.f32.gmra.mrb[0].mxu0 %v1068
  %v1147 = vpop.f32.mrb[0].mxu0
  %v1148 = vadd.f32 %v1063, %v1147
  %v1149 = vpop.f32.mrb[0].mxu0
  %1150 = vmatprep.mubr.f32.mxu0 0.0
  %1151 = vmatmul.mubr.f32.gmra.mrb[0].mxu0 %v1071
  %v1152 = vpop.f32.mrb[0].mxu0
  %v1153 = vadd.f32 %v1063, %v1152
  %v1154 = vpop.f32.mrb[0].mxu0
  %1155 = vmatprep.mubr.f32.mxu0 0.0
  %1156 = vmatmul.mubr.f32.gmra.mrb[0].mxu0 %v1074
  %v1157 = vpop.f32.mrb[0].mxu0
  %v1158 = vadd.f32 %v1063, %v1157
  %v1159 = vpop.f32.mrb[0].mxu0
  %1160 = vdwg.mxu0
  %v1161 = vxor.u32 %v1143, 2147483648
  %v1162 = vxor.u32 %v1148, 2147483648
  %v1163 = vxor.u32 %v1153, 2147483648
  %v1164 = vxor.u32 %v1158, 2147483648
  %v1165 = vmul.f32 %v1161, 1.442695
  %v1166 = vpow.pop %v1165
  %v1167 = vmul.f32 %v1162, 1.442695
  %v1168 = vpow.pop %v1167
  %v1169 = vmul.f32 %v1163, 1.442695
  %v1170 = vpow.pop %v1169
  %v1171 = vmul.f32 %v1164, 1.442695
  %v1172 = vpow.pop %v1171
  %v1173 = vadd.f32 %v1166, 1.0
  %v1174 = vadd.f32 %v1168, 1.0
  %v1175 = vadd.f32 %v1170, 1.0
  %v1176 = vadd.f32 %v1172, 1.0
  %v1177 = vrcp.pop %v1173
  %v1178 = vmul.f32 1.0, %v1177
  %v1179 = vrcp.pop %v1174
  %v1180 = vmul.f32 1.0, %v1179
  %v1181 = vrcp.pop %v1175
  %v1182 = vmul.f32 1.0, %v1181
  %v1183 = vrcp.pop %v1176
  %v1184 = vmul.f32 1.0, %v1183
  %v1185 = vld [vmem:[%s1 + $0x120] sm:$0xff]
  %v1186 = vld [vmem:[%s1 + $0x128] sm:$0xff]
  %v1187 = vld [vmem:[%s1 + $0x130] sm:$0xff]
  %v1188 = vld [vmem:[%s1 + $0x138] sm:$0xff]
  %v1189 = vld [vmem:[%s1 + $0x140] sm:$0x1]
  %v1190 = vlaneseq
  %v1191 = vshrl.u32 %v1190, 7
  %v1192 = vsub.s32 0, %v1191
  %v1193 = vrot.slane %v1189, %v1192
  %v1195 = vsel %vm133, %v1178, 0
  %v1198 = vsel %vm133, %v1180, 0
  %v1201 = vsel %vm133, %v1182, 0
  %v1204 = vsel %vm133, %v1184, 0
  %1206 = vmatprep.subr.mxu0 0.0
  %1207 = vmatpush1.msra.mxu0 %v1185
  %1208 = vmatprep.subr.mxu0 0.0
  %1209 = vmatpush1.msra.mxu0 %v1186
  %1210 = vmatprep.subr.mxu0 0.0
  %1211 = vmatpush1.msra.mxu0 %v1187
  %1212 = vmatprep.subr.mxu0 0.0
  %1213 = vmatpush1.msra.mxu0 %v1188
  %1214 = vmatprep.subr.mxu0 0.0
  %1215 = vmatpush1.msra.mxu0 0.0
  %1216 = vmatprep.subr.mxu0 0.0
  %1217 = vmatpush1.msra.mxu0 0.0
  %1218 = vmatprep.subr.mxu0 0.0
  %1219 = vmatpush1.msra.mxu0 0.0
  %1220 = vmatprep.subr.mxu0 0.0
  %1221 = vmatpush1.msra.mxu0 0.0
  %1222 = vmatprep.subr.mxu0 0.0
  %1223 = vmatpush1.msra.mxu0 0.0
  %1224 = vmatprep.subr.mxu0 0.0
  %1225 = vmatpush1.msra.mxu0 0.0
  %1226 = vmatprep.subr.mxu0 0.0
  %1227 = vmatpush1.msra.mxu0 0.0
  %1228 = vmatprep.subr.mxu0 0.0
  %1229 = vmatpush1.msra.mxu0 0.0
  %1230 = vmatprep.subr.mxu0 0.0
  %1231 = vmatpush1.msra.mxu0 0.0
  %1232 = vmatprep.subr.mxu0 0.0
  %1233 = vmatpush1.msra.mxu0 0.0
  %1234 = vmatprep.subr.mxu0 0.0
  %1235 = vmatpush1.msra.mxu0 0.0
  %1236 = vmatprep.subr.mxu0 0.0
  %1237 = vmatpush1.msra.mxu0 0.0
  %1238 = vmatprep.subr.mxu0 0.0
  %1239 = vmatpush1.msra.mxu0 0.0
  %1240 = vmatprep.subr.mxu0 0.0
  %1241 = vmatpush1.msra.mxu0 0.0
  %1242 = vmatprep.subr.mxu0 0.0
  %1243 = vmatpush1.msra.mxu0 0.0
  %1244 = vmatprep.subr.mxu0 0.0
  %1245 = vmatpush1.msra.mxu0 0.0
  %1246 = vmatprep.subr.mxu0 0.0
  %1247 = vmatpush1.msra.mxu0 0.0
  %1248 = vmatprep.subr.mxu0 0.0
  %1249 = vmatpush1.msra.mxu0 0.0
  %1250 = vmatprep.subr.mxu0 0.0
  %1251 = vmatpush1.msra.mxu0 0.0
  %1252 = vmatprep.subr.mxu0 0.0
  %1253 = vmatpush1.msra.mxu0 0.0
  %1254 = vmatprep.subr.mxu0 0.0
  %1255 = vmatpush1.msra.mxu0 0.0
  %1256 = vmatprep.subr.mxu0 0.0
  %1257 = vmatpush1.msra.mxu0 0.0
  %1258 = vmatprep.subr.mxu0 0.0
  %1259 = vmatpush1.msra.mxu0 0.0
  %1260 = vmatprep.subr.mxu0 0.0
  %1261 = vmatpush1.msra.mxu0 0.0
  %1262 = vmatprep.subr.mxu0 0.0
  %1263 = vmatpush1.msra.mxu0 0.0
  %1264 = vmatprep.subr.mxu0 0.0
  %1265 = vmatpush1.msra.mxu0 0.0
  %1266 = vmatprep.subr.mxu0 0.0
  %1267 = vmatpush1.msra.mxu0 0.0
  %1268 = vmatprep.subr.mxu0 0.0
  %1269 = vmatpush1.msra.mxu0 0.0
  %1270 = vmatprep.mubr.f32.mxu0 0.0
  %1271 = vmatmul.mubr.f32.gmra.mrb[0].mxu0 %v1195
  %v1272 = vpop.f32.mrb[0].mxu0
  %v1273 = vadd.f32 %v1193, %v1272
  %v1274 = vpop.f32.mrb[0].mxu0
  %1275 = vmatprep.mubr.f32.mxu0 0.0
  %1276 = vmatmul.mubr.f32.gmra.mrb[0].mxu0 %v1198
  %v1277 = vpop.f32.mrb[0].mxu0
  %v1278 = vadd.f32 %v1193, %v1277
  %v1279 = vpop.f32.mrb[0].mxu0
  %1280 = vmatprep.mubr.f32.mxu0 0.0
  %1281 = vmatmul.mubr.f32.gmra.mrb[0].mxu0 %v1201
  %v1282 = vpop.f32.mrb[0].mxu0
  %v1283 = vadd.f32 %v1193, %v1282
  %v1284 = vpop.f32.mrb[0].mxu0
  %1285 = vmatprep.mubr.f32.mxu0 0.0
  %1286 = vmatmul.mubr.f32.gmra.mrb[0].mxu0 %v1204
  %v1287 = vpop.f32.mrb[0].mxu0
  %v1288 = vadd.f32 %v1193, %v1287
  %v1289 = vpop.f32.mrb[0].mxu0
  %1290 = vdwg.mxu0
  %v1291 = vmax.f32 %v1273, 0.0
  %v1292 = vmax.f32 %v1278, 0.0
  %v1293 = vmax.f32 %v1283, 0.0
  %v1294 = vmax.f32 %v1288, 0.0
  %vm1295 = vcmp.ne.f32.partialorder %v1273, %v1273
  %vm1296 = vcmp.ne.f32.partialorder %v1278, %v1278
  %vm1297 = vcmp.ne.f32.partialorder %v1283, %v1283
  %vm1298 = vcmp.ne.f32.partialorder %v1288, %v1288
  %v1299 = vadd.f32 %v1273, 0.0
  %v1300 = vadd.f32 %v1278, 0.0
  %v1301 = vadd.f32 %v1283, 0.0
  %v1302 = vadd.f32 %v1288, 0.0
  %v1303 = vand.u32 2147483647, %v1273
  %v1304 = vand.u32 2147483647, %v1278
  %v1305 = vand.u32 2147483647, %v1283
  %v1306 = vand.u32 2147483647, %v1288
  %v1307 = vsub.f32 0.0, %v1303
  %v1308 = vsub.f32 0.0, %v1304
  %v1309 = vsub.f32 0.0, %v1305
  %v1310 = vsub.f32 0.0, %v1306
  %v1311 = vmul.f32 %v1307, 1.442695
  %v1312 = vpow.pop %v1311
  %v1313 = vmul.f32 %v1308, 1.442695
  %v1314 = vpow.pop %v1313
  %v1315 = vmul.f32 %v1309, 1.442695
  %v1316 = vpow.pop %v1315
  %v1317 = vmul.f32 %v1310, 1.442695
  %v1318 = vpow.pop %v1317
  %v1319 = vadd.f32 %v1312, 1.0
  %v1320 = vlog2.pop %v1319
  %v1321 = vmul.f32 %v1320, 0.6931472
  %v1322 = vmul.f32 -0.5, %v1312
  %v1323 = vadd.f32 %v1322, 1.0
  %v1324 = vmul.f32 %v1323, %v1312
  %v1325 = vand.u32 2147483647, %v1312
  %vm1326 = vcmp.lt.f32.partialorder %v1325, 0.0004427343
  %v1327 = vsel %vm1326, %v1324, %v1321
  %v1328 = vadd.f32 %v1314, 1.0
  %v1329 = vlog2.pop %v1328
  %v1330 = vmul.f32 %v1329, 0.6931472
  %v1331 = vmul.f32 -0.5, %v1314
  %v1332 = vadd.f32 %v1331, 1.0
  %v1333 = vmul.f32 %v1332, %v1314
  %v1334 = vand.u32 2147483647, %v1314
  %vm1335 = vcmp.lt.f32.partialorder %v1334, 0.0004427343
  %v1336 = vsel %vm1335, %v1333, %v1330
  %v1337 = vadd.f32 %v1316, 1.0
  %v1338 = vlog2.pop %v1337
  %v1339 = vmul.f32 %v1338, 0.6931472
  %v1340 = vmul.f32 -0.5, %v1316
  %v1341 = vadd.f32 %v1340, 1.0
  %v1342 = vmul.f32 %v1341, %v1316
  %v1343 = vand.u32 2147483647, %v1316
  %vm1344 = vcmp.lt.f32.partialorder %v1343, 0.0004427343
  %v1345 = vsel %vm1344, %v1342, %v1339
  %v1346 = vadd.f32 %v1318, 1.0
  %v1347 = vlog2.pop %v1346
  %v1348 = vmul.f32 %v1347, 0.6931472
  %v1349 = vmul.f32 -0.5, %v1318
  %v1350 = vadd.f32 %v1349, 1.0
  %v1351 = vmul.f32 %v1350, %v1318
  %v1352 = vand.u32 2147483647, %v1318
  %vm1353 = vcmp.lt.f32.partialorder %v1352, 0.0004427343
  %v1354 = vsel %vm1353, %v1351, %v1348
  %v1355 = vadd.f32 %v1291, %v1327
  %v1356 = vadd.f32 %v1292, %v1336
  %v1357 = vadd.f32 %v1293, %v1345
  %v1358 = vadd.f32 %v1294, %v1354
  %v1359 = vsel %vm1295, %v1299, %v1355
  %v1360 = vsel %vm1296, %v1300, %v1356
  %v1361 = vsel %vm1297, %v1301, %v1357
  %v1362 = vsel %vm1298, %v1302, %v1358
  %v1363 = vmul.f32 %v1359, 0.9
  %v1364 = vmul.f32 %v1360, 0.9
  %v1365 = vmul.f32 %v1361, 0.9
  %v1366 = vmul.f32 %v1362, 0.9
  %v1367 = vadd.f32 %v1363, 0.1
  %v1368 = vadd.f32 %v1364, 0.1
  %v1369 = vadd.f32 %v1365, 0.1
  %v1370 = vadd.f32 %v1366, 0.1
  %v1371 = vsel %vm790, %v1273, %v1367
  %v1372 = vsel %vm790, %v1278, %v1368
  %v1373 = vsel %vm790, %v1283, %v1369
  %v1374 = vsel %vm790, %v1288, %v1370
  %1375 = vst.msk [vmem:[%s3] sm:$0xff] %vm26, %v1371
  %1376 = vst.msk [vmem:[%s3 + $0x8] sm:$0xff] %vm26, %v1372
  %1377 = vst.msk [vmem:[%s3 + $0x10] sm:$0xff] %vm26, %v1373
  %1378 = vst.msk [vmem:[%s3 + $0x18] sm:$0xff] %vm26, %v1374
  // Predicated region
  $region10: #{neural_process_apply.1} parent=0 // pred_check
    _
  $region11: #{neural_process_apply.1} parent=0 // pred_check_branch
    %1380 = sbr.rel (0) target = $region13
  $region12: #{neural_process_apply.1} parent=0 // pred_region
    _
  $region13: #{neural_process_apply.1} parent=0 // pred_fallthru
    _
  // Predicated region
  $region14: #{neural_process_apply.1} parent=0 // pred_check
    _
  $region15: #{neural_process_apply.1} parent=0 // pred_check_branch
    %1382 = sbr.rel (0) target = $region17
  $region16: #{neural_process_apply.1} parent=0 // pred_region
    _
  $region17: #{neural_process_apply.1} parent=0 // pred_fallthru
    _
  // Predicated region
  $region18: #{neural_process_apply.1} parent=0 // pred_check
    _
  $region19: #{neural_process_apply.1} parent=0 // pred_check_branch
    %1384 = sbr.rel (0) target = $region21
  $region20: #{neural_process_apply.1} parent=0 // pred_region
    _
  $region21: #{neural_process_apply.1} parent=0 // pred_fallthru
    _
  // Predicated region
  $region22: #{neural_process_apply.1} parent=0 // pred_check
    _
  $region23: #{neural_process_apply.1} parent=0 // pred_check_branch
    %1386 = sbr.rel (0) target = $region25
  $region24: #{neural_process_apply.1} parent=0 // pred_region
    _
  $region25: #{neural_process_apply.1} parent=0 // pred_fallthru
    _

</llo_original>
